<compile_context>
chip_gen: v6e
topology: v6e:2x2x1
jax: 0.10.0
libtpu: 0.0.40
codegen_flags: <defaults>
</compile_context>

<pallas_src>
import functools

import jax
import jax.numpy as jnp
from jax.experimental import pallas as pl
from jax.experimental.pallas import tpu as pltpu


# Small, module-consistent sizes (original: ldim=512, img_size=3*64*64=12288).
LDIM = 512               # latent dim, matches the module
IMG_SIZE = 3 * 16 * 16   # 768 (scaled-down 3*64*64 image)
EDIM = IMG_SIZE          # edim = img_size in the module
BN_EPS = 0.8             # nn.BatchNorm1d(n, 0.8) -> eps = 0.8
BATCH = 8


def _batchnorm_train(x, gamma, beta, eps):
    """Training-mode BatchNorm1d: batch mean / biased batch variance + affine."""
    m = jnp.mean(x, axis=0, keepdims=True)
    v = jnp.mean((x - m) ** 2, axis=0, keepdims=True)   # biased (PyTorch train)
    return (x - m) * jax.lax.rsqrt(v + eps) * gamma + beta


def generator_kernel(z_ref, g1_ref, b1_ref, w1_ref, g2_ref, b2_ref, w2_ref,
                     o_ref, *, eps):
    """Fused forward: BN -> Linear -> LeakyReLU -> BN -> Linear -> Tanh.

    Single invocation (no grid); every operand is fully VMEM-resident, so BN
    stats are computed exactly once and the intermediate never touches HBM.
    """
    # BatchNorm1d(ldim) with exact batch statistics.
    zn = _batchnorm_train(z_ref[...], g1_ref[...], b1_ref[...], eps)
    # Linear(ldim, edim, bias=False) on the MXU, f32 accumulation.
    h = jnp.dot(zn, w1_ref[...], preferred_element_type=jnp.float32)
    # LeakyReLU(0.2)
    h = jnp.where(h > 0, h, 0.2 * h)
    # BatchNorm1d(edim)
    hn = _batchnorm_train(h, g2_ref[...], b2_ref[...], eps)
    # Linear(edim, img_size, bias=False) -> Tanh
    y = jnp.dot(hn, w2_ref[...], preferred_element_type=jnp.float32)
    o_ref[...] = jnp.tanh(y)


def generator_pallas(z, w1, g1, b1, w2, g2, b2):
    B, K = z.shape
    Kw, E = w1.shape
    Ew, N = w2.shape
    assert K == Kw and E == Ew

    vmem = pl.BlockSpec(memory_space=pltpu.MemorySpace.VMEM)
    flops = 2 * B * K * E + 2 * B * E * N                 # the two matmuls
    bytes_accessed = 4 * (B * K + K * E + E * N + 2 * K + 2 * E + B * N)
    return pl.pallas_call(
        functools.partial(generator_kernel, eps=BN_EPS),
        out_shape=jax.ShapeDtypeStruct((B, N), jnp.float32),
        in_specs=[vmem] * 7,
        out_specs=vmem,
        cost_estimate=pl.CostEstimate(
            flops=flops,
            transcendentals=B * N + K + E,                # tanh + rsqrt
            bytes_accessed=bytes_accessed),
        compiler_params=pltpu.CompilerParams(
            vmem_limit_bytes=32 * 1024 * 1024),
    )(z, g1, b1, w1, g2, b2, w2)


def init_params(key):
    k1, k2, k3, k4, k5, k6 = jax.random.split(key, 6)
    # Linear weights stored as (in, out): y = x @ W  (== PyTorch x @ weight.T).
    w1 = jax.random.normal(k1, (LDIM, EDIM), jnp.float32) / jnp.sqrt(LDIM)
    w2 = jax.random.normal(k2, (EDIM, IMG_SIZE), jnp.float32) / jnp.sqrt(EDIM)
    # BatchNorm affine params (PyTorch init is gamma=1, beta=0; perturb them so
    # the correctness check actually exercises the affine path).
    g1 = 1.0 + 0.1 * jax.random.normal(k3, (1, LDIM), jnp.float32)
    b1 = 0.1 * jax.random.normal(k4, (1, LDIM), jnp.float32)
    g2 = 1.0 + 0.1 * jax.random.normal(k5, (1, EDIM), jnp.float32)
    b2 = 0.1 * jax.random.normal(k6, (1, EDIM), jnp.float32)
    return w1, g1, b1, w2, g2, b2


@jax.jit
def generator_forward(z, params):
    w1, g1, b1, w2, g2, b2 = params
    return generator_pallas(z, w1, g1, b1, w2, g2, b2)


def reference_forward(z, params):
    """Pure-XLA reference at HIGHEST matmul precision (ground truth)."""
    w1, g1, b1, w2, g2, b2 = params
    h = jnp.dot(_batchnorm_train(z, g1, b1, BN_EPS), w1,
                precision=jax.lax.Precision.HIGHEST)
    h = jnp.where(h > 0, h, 0.2 * h)
    y = jnp.dot(_batchnorm_train(h, g2, b2, BN_EPS), w2,
                precision=jax.lax.Precision.HIGHEST)
    return jnp.tanh(y)


if __name__ == "__main__":
    key = jax.random.PRNGKey(0)
    kz, kp = jax.random.split(key)
    z = jax.random.normal(kz, (BATCH, LDIM), jnp.float32)
    params = init_params(kp)

    out = jax.block_until_ready(generator_forward(z, params))
    assert out.shape == (BATCH, IMG_SIZE)
    assert out.dtype == jnp.float32

    ref = reference_forward(z, params)
    # Outputs are tanh-bounded in [-1, 1].  Tolerance leaves room for MXU
    # matmul precision differences (kernel default precision vs HIGHEST
    # reference) while still catching any structural/semantic bug.
    max_err = float(jnp.max(jnp.abs(out - ref)))
    assert jnp.allclose(out, ref, atol=2e-2, rtol=2e-2), f"max abs err {max_err}"
    print("KERNEL_OK")
</pallas_src>

<mosaic_0001>
module attributes {stable_mosaic.version = 11 : i64} {
  func.func @generator_kernel(%arg0: memref<8x512xf32, #tpu.memory_space<vmem>>, %arg1: memref<1x512xf32, #tpu.memory_space<vmem>>, %arg2: memref<1x512xf32, #tpu.memory_space<vmem>>, %arg3: memref<512x768xf32, #tpu.memory_space<vmem>>, %arg4: memref<1x768xf32, #tpu.memory_space<vmem>>, %arg5: memref<1x768xf32, #tpu.memory_space<vmem>>, %arg6: memref<768x768xf32, #tpu.memory_space<vmem>>, %arg7: memref<8x768xf32, #tpu.memory_space<vmem>>) attributes {dimension_semantics = [], scalar_prefetch = 0 : i64, scratch_operands = 0 : i64, tpu.core_type = #tpu.core_type<tc>} {
    %c0 = arith.constant 0 : index
    %c0_0 = arith.constant 0 : index
    %0 = vector.load %arg0[%c0, %c0_0] : memref<8x512xf32, #tpu.memory_space<vmem>>, vector<8x512xf32>
    %c0_1 = arith.constant 0 : index
    %c0_2 = arith.constant 0 : index
    %1 = vector.load %arg1[%c0_1, %c0_2] : memref<1x512xf32, #tpu.memory_space<vmem>>, vector<1x512xf32>
    %c0_3 = arith.constant 0 : index
    %c0_4 = arith.constant 0 : index
    %2 = vector.load %arg2[%c0_3, %c0_4] : memref<1x512xf32, #tpu.memory_space<vmem>>, vector<1x512xf32>
    %cst = arith.constant dense<0.000000e+00> : vector<512xf32>
    %3 = vector.multi_reduction <add>, %0, %cst [0] : vector<8x512xf32> to vector<512xf32>
    %4 = vector.shape_cast %3 : vector<512xf32> to vector<1x512xf32>
    %cst_5 = arith.constant 8.000000e+00 : f32
    %5 = vector.broadcast %cst_5 : f32 to vector<1x512xf32>
    %6 = arith.divf %4, %5 : vector<1x512xf32>
    %7 = vector.broadcast %6 : vector<1x512xf32> to vector<8x512xf32>
    %8 = arith.subf %0, %7 : vector<8x512xf32>
    %9 = arith.mulf %8, %8 : vector<8x512xf32>
    %cst_6 = arith.constant dense<0.000000e+00> : vector<512xf32>
    %10 = vector.multi_reduction <add>, %9, %cst_6 [0] : vector<8x512xf32> to vector<512xf32>
    %11 = vector.shape_cast %10 : vector<512xf32> to vector<1x512xf32>
    %cst_7 = arith.constant 8.000000e+00 : f32
    %12 = vector.broadcast %cst_7 : f32 to vector<1x512xf32>
    %13 = arith.divf %11, %12 : vector<1x512xf32>
    %14 = vector.broadcast %6 : vector<1x512xf32> to vector<8x512xf32>
    %15 = arith.subf %0, %14 : vector<8x512xf32>
    %cst_8 = arith.constant 8.000000e-01 : f32
    %16 = vector.broadcast %cst_8 : f32 to vector<1x512xf32>
    %17 = arith.addf %13, %16 : vector<1x512xf32>
    %18 = math.rsqrt %17 : vector<1x512xf32>
    %19 = vector.broadcast %18 : vector<1x512xf32> to vector<8x512xf32>
    %20 = arith.mulf %15, %19 : vector<8x512xf32>
    %21 = vector.broadcast %1 : vector<1x512xf32> to vector<8x512xf32>
    %22 = arith.mulf %20, %21 : vector<8x512xf32>
    %23 = vector.broadcast %2 : vector<1x512xf32> to vector<8x512xf32>
    %24 = arith.addf %22, %23 : vector<8x512xf32>
    %c0_9 = arith.constant 0 : index
    %c0_10 = arith.constant 0 : index
    %25 = vector.load %arg3[%c0_9, %c0_10] : memref<512x768xf32, #tpu.memory_space<vmem>>, vector<512x768xf32>
    %cst_11 = arith.constant dense<0.000000e+00> : vector<8x768xf32>
    %26 = tpu.matmul %24, %25, %cst_11 {dimension_numbers = #tpu.dot_dimension_numbers<[1], [0], [0], [1], [0, 0, 1, 1], [], []>} : vector<8x512xf32>, vector<512x768xf32>, vector<8x768xf32> -> vector<8x768xf32>
    %cst_12 = arith.constant 0.000000e+00 : f32
    %27 = vector.broadcast %cst_12 : f32 to vector<8x768xf32>
    %28 = arith.cmpf ogt, %26, %27 : vector<8x768xf32>
    %cst_13 = arith.constant 2.000000e-01 : f32
    %29 = vector.broadcast %cst_13 : f32 to vector<8x768xf32>
    %30 = arith.mulf %29, %26 : vector<8x768xf32>
    %31 = arith.select %28, %26, %30 : vector<8x768xi1>, vector<8x768xf32>
    %c0_14 = arith.constant 0 : index
    %c0_15 = arith.constant 0 : index
    %32 = vector.load %arg4[%c0_14, %c0_15] : memref<1x768xf32, #tpu.memory_space<vmem>>, vector<1x768xf32>
    %c0_16 = arith.constant 0 : index
    %c0_17 = arith.constant 0 : index
    %33 = vector.load %arg5[%c0_16, %c0_17] : memref<1x768xf32, #tpu.memory_space<vmem>>, vector<1x768xf32>
    %cst_18 = arith.constant dense<0.000000e+00> : vector<768xf32>
    %34 = vector.multi_reduction <add>, %31, %cst_18 [0] : vector<8x768xf32> to vector<768xf32>
    %35 = vector.shape_cast %34 : vector<768xf32> to vector<1x768xf32>
    %cst_19 = arith.constant 8.000000e+00 : f32
    %36 = vector.broadcast %cst_19 : f32 to vector<1x768xf32>
    %37 = arith.divf %35, %36 : vector<1x768xf32>
    %38 = vector.broadcast %37 : vector<1x768xf32> to vector<8x768xf32>
    %39 = arith.subf %31, %38 : vector<8x768xf32>
    %40 = arith.mulf %39, %39 : vector<8x768xf32>
    %cst_20 = arith.constant dense<0.000000e+00> : vector<768xf32>
    %41 = vector.multi_reduction <add>, %40, %cst_20 [0] : vector<8x768xf32> to vector<768xf32>
    %42 = vector.shape_cast %41 : vector<768xf32> to vector<1x768xf32>
    %cst_21 = arith.constant 8.000000e+00 : f32
    %43 = vector.broadcast %cst_21 : f32 to vector<1x768xf32>
    %44 = arith.divf %42, %43 : vector<1x768xf32>
    %45 = vector.broadcast %37 : vector<1x768xf32> to vector<8x768xf32>
    %46 = arith.subf %31, %45 : vector<8x768xf32>
    %cst_22 = arith.constant 8.000000e-01 : f32
    %47 = vector.broadcast %cst_22 : f32 to vector<1x768xf32>
    %48 = arith.addf %44, %47 : vector<1x768xf32>
    %49 = math.rsqrt %48 : vector<1x768xf32>
    %50 = vector.broadcast %49 : vector<1x768xf32> to vector<8x768xf32>
    %51 = arith.mulf %46, %50 : vector<8x768xf32>
    %52 = vector.broadcast %32 : vector<1x768xf32> to vector<8x768xf32>
    %53 = arith.mulf %51, %52 : vector<8x768xf32>
    %54 = vector.broadcast %33 : vector<1x768xf32> to vector<8x768xf32>
    %55 = arith.addf %53, %54 : vector<8x768xf32>
    %c0_23 = arith.constant 0 : index
    %c0_24 = arith.constant 0 : index
    %56 = vector.load %arg6[%c0_23, %c0_24] : memref<768x768xf32, #tpu.memory_space<vmem>>, vector<768x768xf32>
    %cst_25 = arith.constant dense<0.000000e+00> : vector<8x768xf32>
    %57 = tpu.matmul %55, %56, %cst_25 {dimension_numbers = #tpu.dot_dimension_numbers<[1], [0], [0], [1], [0, 0, 1, 1], [], []>} : vector<8x768xf32>, vector<768x768xf32>, vector<8x768xf32> -> vector<8x768xf32>
    %58 = math.tanh %57 : vector<8x768xf32>
    %c0_26 = arith.constant 0 : index
    %c0_27 = arith.constant 0 : index
    %59 = vector.load %arg7[%c0_26, %c0_27] : memref<8x768xf32, #tpu.memory_space<vmem>>, vector<8x768xf32>
    tpu.vector_store %arg7[%c0_26, %c0_27], %58 {strides = array<i32>} : memref<8x768xf32, #tpu.memory_space<vmem>>, vector<8x768xf32>,
    return
  }
}

</mosaic_0001>

<llo_original>
// kernel: generator_forward.1
$region0: #{generator_forward.1}
  #allocation0 [shape = 'u32[]', space=smem, size = 0x4, offset = 0x4, fixed_abs, tag = 'smem constant byte address 0x4 - core index']
  #allocation1 [shape = 'u32[144,128]{1,0:T(1,128)}', space=vmem, size = 0x12000, scoped, tag = 'internal scratch']
  %s0 = inlined_call_operand.hbm [shape: f32[8,512], index: 0, kind: input, shape index: {}]
  %s1 = inlined_call_operand.hbm [shape: f32[1,512], index: 1, kind: input, shape index: {}]
  %s2 = inlined_call_operand.hbm [shape: f32[1,512], index: 2, kind: input, shape index: {}]
  %s3 = inlined_call_operand.hbm [shape: f32[512,768], index: 3, kind: input, shape index: {}]
  %s4 = inlined_call_operand.hbm [shape: f32[1,768], index: 4, kind: input, shape index: {}]
  %s5 = inlined_call_operand.hbm [shape: f32[1,768], index: 5, kind: input, shape index: {}]
  %s6 = inlined_call_operand.hbm [shape: f32[768,768], index: 6, kind: input, shape index: {}]
  %s7 = inlined_call_operand.hbm [shape: f32[8,768], index: 7, kind: output, shape index: {}]
  %s8 = sld [smem:[#allocation0]]
  $region66: #{generator_forward.1} parent=0
    _
  %s10 = ssub.s32 1, %s8
  %s11 = scalar_select 0, %s10, %s8
  $region1: #{generator_forward.1} parent=0
    #allocation2 [shape = 'u8[16384]{0}', space=vmem, size = 0x4000, scoped, tag = 'input window, operand 0, single buffered']
    #allocation3 [shape = 's32[1]{0}', space=sflag, size = 0x4, scoped, tag = 'scoped memory for generator_forward.1']
    #allocation4 [shape = 's32[1]{0}', space=sflag, size = 0x4, scoped, tag = 'scoped memory for generator_forward.1']
    #allocation5 [shape = 'u8[2048]{0}', space=vmem, size = 0x800, scoped, tag = 'input window, operand 1, single buffered']
    #allocation6 [shape = 's32[1]{0}', space=sflag, size = 0x4, scoped, tag = 'scoped memory for generator_forward.1']
    #allocation7 [shape = 'u8[2048]{0}', space=vmem, size = 0x800, scoped, tag = 'input window, operand 2, single buffered']
    #allocation8 [shape = 'u8[1572864]{0}', space=vmem, size = 0x180000, scoped, tag = 'input window, operand 3, single buffered']
    #allocation9 [shape = 's32[1]{0}', space=sflag, size = 0x4, scoped, tag = 'scoped memory for generator_forward.1']
    #allocation10 [shape = 'u8[3072]{0}', space=vmem, size = 0xc00, scoped, tag = 'input window, operand 4, single buffered']
    #allocation11 [shape = 'u8[3072]{0}', space=vmem, size = 0xc00, scoped, tag = 'input window, operand 5, single buffered']
    #allocation12 [shape = 's32[1]{0}', space=sflag, size = 0x4, scoped, tag = 'scoped memory for generator_forward.1']
    #allocation13 [shape = 'u8[2359296]{0}', space=vmem, size = 0x240000, scoped, tag = 'input window, operand 6, single buffered']
    #allocation14 [shape = 'u8[24576]{0}', space=vmem, size = 0x6000, scoped, tag = 'output window, operand 0, single buffered']
    %12 = vsyncpa [#allocation3], 0
    %13 = vsyncpa [#allocation6], 0
    %14 = vsyncpa [#allocation9], 0
    %15 = vsyncpa [#allocation12], 0
    %16 = vsyncpa [#allocation4], 0
    // Predicated region
    $region2: #{generator_forward.1} parent=1 // pred_check
      _
    $region3: #{generator_forward.1} parent=1 // pred_check_branch
      %18 = sbr.rel (0) target = $region5
    $region4: #{generator_forward.1} parent=1 // pred_region
      %s20 = ssub.s32 512, 512
      %21 = vsyncadd [#allocation3], %s20
      %s23 = sshll.u32 [#allocation2], 4
      %s24 = int_to_ptr.vmem [resolvable:$true] %s23
      %26 = dma.hbm_to_vmem [thread:$0]  %s0, 512, %s24, [#allocation3]
    $region5: #{generator_forward.1} parent=1 // pred_fallthru
      _
    // Predicated region
    $region6: #{generator_forward.1} parent=1 // pred_check
      _
    $region7: #{generator_forward.1} parent=1 // pred_check_branch
      %28 = sbr.rel (0) target = $region9
    $region8: #{generator_forward.1} parent=1 // pred_region
      %s30 = ssub.s32 64, 64
      %31 = vsyncadd [#allocation6], %s30
      %s33 = sshll.u32 [#allocation5], 4
      %s34 = int_to_ptr.vmem [resolvable:$true] %s33
      %36 = dma.hbm_to_vmem [thread:$0]  %s1, 64, %s34, [#allocation6]
    $region9: #{generator_forward.1} parent=1 // pred_fallthru
      _
    // Predicated region
    $region10: #{generator_forward.1} parent=1 // pred_check
      _
    $region11: #{generator_forward.1} parent=1 // pred_check_branch
      %38 = sbr.rel (0) target = $region13
    $region12: #{generator_forward.1} parent=1 // pred_region
      %s40 = ssub.s32 64, 64
      %41 = vsyncadd [#allocation6], %s40
      %s43 = sshll.u32 [#allocation7], 4
      %s44 = int_to_ptr.vmem [resolvable:$true] %s43
      %46 = dma.hbm_to_vmem [thread:$0]  %s2, 64, %s44, [#allocation6]
    $region13: #{generator_forward.1} parent=1 // pred_fallthru
      _
    // Predicated region
    $region14: #{generator_forward.1} parent=1 // pred_check
      _
    $region15: #{generator_forward.1} parent=1 // pred_check_branch
      %48 = sbr.rel (0) target = $region17
    $region16: #{generator_forward.1} parent=1 // pred_region
      %s50 = ssub.s32 49152, 49152
      %51 = vsyncadd [#allocation9], %s50
      %s52 = sshll.u32 [#allocation8], 4
      %s53 = int_to_ptr.vmem [resolvable:$true] %s52
      %58 = dma.hbm_to_vmem [thread:$0]  %s3, 49152, %s53, [#allocation9], 768, 768, 48
    $region17: #{generator_forward.1} parent=1 // pred_fallthru
      _
    // Predicated region
    $region18: #{generator_forward.1} parent=1 // pred_check
      _
    $region19: #{generator_forward.1} parent=1 // pred_check_branch
      %60 = sbr.rel (0) target = $region21
    $region20: #{generator_forward.1} parent=1 // pred_region
      %s62 = ssub.s32 96, 96
      %63 = vsyncadd [#allocation9], %s62
      %s65 = sshll.u32 [#allocation10], 4
      %s66 = int_to_ptr.vmem [resolvable:$true] %s65
      %68 = dma.hbm_to_vmem [thread:$0]  %s4, 96, %s66, [#allocation9]
    $region21: #{generator_forward.1} parent=1 // pred_fallthru
      _
    // Predicated region
    $region22: #{generator_forward.1} parent=1 // pred_check
      _
    $region23: #{generator_forward.1} parent=1 // pred_check_branch
      %70 = sbr.rel (0) target = $region25
    $region24: #{generator_forward.1} parent=1 // pred_region
      %s72 = ssub.s32 96, 96
      %73 = vsyncadd [#allocation12], %s72
      %s75 = sshll.u32 [#allocation11], 4
      %s76 = int_to_ptr.vmem [resolvable:$true] %s75
      %78 = dma.hbm_to_vmem [thread:$0]  %s5, 96, %s76, [#allocation12]
    $region25: #{generator_forward.1} parent=1 // pred_fallthru
      _
    // Predicated region
    $region26: #{generator_forward.1} parent=1 // pred_check
      _
    $region27: #{generator_forward.1} parent=1 // pred_check_branch
      %80 = sbr.rel (0) target = $region29
    $region28: #{generator_forward.1} parent=1 // pred_region
      %s82 = ssub.s32 73728, 73728
      %83 = vsyncadd [#allocation12], %s82
      %s84 = sshll.u32 [#allocation13], 4
      %s85 = int_to_ptr.vmem [resolvable:$true] %s84
      %90 = dma.hbm_to_vmem [thread:$0]  %s6, 73728, %s85, [#allocation12], 768, 768, 48
    $region29: #{generator_forward.1} parent=1 // pred_fallthru
      _
    // Predicated region
    $region30: #{generator_forward.1} parent=1 // pred_check
      _
    $region31: #{generator_forward.1} parent=1 // pred_check_branch
      %92 = sbr.rel (0) target = $region33
    $region32: #{generator_forward.1} parent=1 // pred_region
      %93 = dma.done [#allocation3], 512
    $region33: #{generator_forward.1} parent=1 // pred_fallthru
      _
    // Predicated region
    $region34: #{generator_forward.1} parent=1 // pred_check
      _
    $region35: #{generator_forward.1} parent=1 // pred_check_branch
      %95 = sbr.rel (0) target = $region37
    $region36: #{generator_forward.1} parent=1 // pred_region
      %96 = dma.done [#allocation6], 64
    $region37: #{generator_forward.1} parent=1 // pred_fallthru
      _
    // Predicated region
    $region38: #{generator_forward.1} parent=1 // pred_check
      _
    $region39: #{generator_forward.1} parent=1 // pred_check_branch
      %98 = sbr.rel (0) target = $region41
    $region40: #{generator_forward.1} parent=1 // pred_region
      %99 = dma.done [#allocation6], 64
    $region41: #{generator_forward.1} parent=1 // pred_fallthru
      _
    // Predicated region
    $region42: #{generator_forward.1} parent=1 // pred_check
      _
    $region43: #{generator_forward.1} parent=1 // pred_check_branch
      %101 = sbr.rel (0) target = $region45
    $region44: #{generator_forward.1} parent=1 // pred_region
      %102 = dma.done [#allocation9], 49152
    $region45: #{generator_forward.1} parent=1 // pred_fallthru
      _
    // Predicated region
    $region46: #{generator_forward.1} parent=1 // pred_check
      _
    $region47: #{generator_forward.1} parent=1 // pred_check_branch
      %104 = sbr.rel (0) target = $region49
    $region48: #{generator_forward.1} parent=1 // pred_region
      %105 = dma.done [#allocation9], 96
    $region49: #{generator_forward.1} parent=1 // pred_fallthru
      _
    // Predicated region
    $region50: #{generator_forward.1} parent=1 // pred_check
      _
    $region51: #{generator_forward.1} parent=1 // pred_check_branch
      %107 = sbr.rel (0) target = $region53
    $region52: #{generator_forward.1} parent=1 // pred_region
      %108 = dma.done [#allocation12], 96
    $region53: #{generator_forward.1} parent=1 // pred_fallthru
      _
    // Predicated region
    $region54: #{generator_forward.1} parent=1 // pred_check
      _
    $region55: #{generator_forward.1} parent=1 // pred_check_branch
      %110 = sbr.rel (0) target = $region57
    $region56: #{generator_forward.1} parent=1 // pred_region
      %111 = dma.done [#allocation12], 73728
    $region57: #{generator_forward.1} parent=1 // pred_fallthru
      _
    %v112 = vld [vmem:[#allocation2] sm:$0xff]
    %v113 = vld [vmem:[#allocation2 + $0x8] sm:$0xff]
    %v114 = vld [vmem:[#allocation2 + $0x10] sm:$0xff]
    %v115 = vld [vmem:[#allocation2 + $0x18] sm:$0xff]
    %v116 = vld [vmem:[#allocation5] sm:$0xf]
    %v117 = vld [vmem:[#allocation7] sm:$0xf]
    %v118 = vrot.slane %v112, 4
    %v119 = vadd.f32 %v112, %v118
    %v120 = vrot.slane %v119, 2
    %v121 = vadd.f32 %v119, %v120
    %v122 = vrot.slane %v121, 1
    %v123 = vadd.f32 %v121, %v122
    %v124 = vrot.slane %v113, 4
    %v125 = vadd.f32 %v113, %v124
    %v126 = vrot.slane %v125, 2
    %v127 = vadd.f32 %v125, %v126
    %v128 = vrot.slane %v127, 1
    %v129 = vadd.f32 %v127, %v128
    %v130 = vrot.slane %v114, 4
    %v131 = vadd.f32 %v114, %v130
    %v132 = vrot.slane %v131, 2
    %v133 = vadd.f32 %v131, %v132
    %v134 = vrot.slane %v133, 1
    %v135 = vadd.f32 %v133, %v134
    %v136 = vrot.slane %v115, 4
    %v137 = vadd.f32 %v115, %v136
    %v138 = vrot.slane %v137, 2
    %v139 = vadd.f32 %v137, %v138
    %v140 = vrot.slane %v139, 1
    %v141 = vadd.f32 %v139, %v140
    %v142 = vrcp.pop 8.0
    %v143 = vmul.f32 %v123, %v142
    %v144 = vmul.f32 %v129, %v142
    %v145 = vmul.f32 %v135, %v142
    %v146 = vmul.f32 %v141, %v142
    %v147 = vsub.f32 %v112, %v143
    %v148 = vsub.f32 %v113, %v144
    %v149 = vsub.f32 %v114, %v145
    %v150 = vsub.f32 %v115, %v146
    %v151 = vmul.f32 %v147, %v147
    %v152 = vmul.f32 %v148, %v148
    %v153 = vmul.f32 %v149, %v149
    %v154 = vmul.f32 %v150, %v150
    %v155 = vrot.slane %v151, 4
    %v156 = vadd.f32 %v151, %v155
    %v157 = vrot.slane %v156, 2
    %v158 = vadd.f32 %v156, %v157
    %v159 = vrot.slane %v158, 1
    %v160 = vadd.f32 %v158, %v159
    %v161 = vrot.slane %v152, 4
    %v162 = vadd.f32 %v152, %v161
    %v163 = vrot.slane %v162, 2
    %v164 = vadd.f32 %v162, %v163
    %v165 = vrot.slane %v164, 1
    %v166 = vadd.f32 %v164, %v165
    %v167 = vrot.slane %v153, 4
    %v168 = vadd.f32 %v153, %v167
    %v169 = vrot.slane %v168, 2
    %v170 = vadd.f32 %v168, %v169
    %v171 = vrot.slane %v170, 1
    %v172 = vadd.f32 %v170, %v171
    %v173 = vrot.slane %v154, 4
    %v174 = vadd.f32 %v154, %v173
    %v175 = vrot.slane %v174, 2
    %v176 = vadd.f32 %v174, %v175
    %v177 = vrot.slane %v176, 1
    %v178 = vadd.f32 %v176, %v177
    %v179 = vmul.f32 %v160, %v142
    %v180 = vmul.f32 %v166, %v142
    %v181 = vmul.f32 %v172, %v142
    %v182 = vmul.f32 %v178, %v142
    %v183 = vadd.f32 %v179, 0.8
    %v184 = vadd.f32 %v180, 0.8
    %v185 = vadd.f32 %v181, 0.8
    %v186 = vadd.f32 %v182, 0.8
    %v187 = vrsqrt.pop %v183
    %v188 = vrsqrt.pop %v184
    %v189 = vrsqrt.pop %v185
    %v190 = vrsqrt.pop %v186
    %v191 = vmul.f32 %v147, %v187
    %v192 = vmul.f32 %v148, %v188
    %v193 = vmul.f32 %v149, %v189
    %v194 = vmul.f32 %v150, %v190
    %v196 = vlaneseq
    %v197 = vshrl.u32 %v196, 7
    %v198 = vsub.s32 0, %v197
    %v199 = vrot.slane %v116, %v198
    %v200 = vlaneseq
    %v201 = vshrl.u32 %v200, 7
    %v202 = vsub.s32 1, %v201
    %v203 = vrot.slane %v116, %v202
    %v204 = vlaneseq
    %v205 = vshrl.u32 %v204, 7
    %v206 = vsub.s32 2, %v205
    %v207 = vrot.slane %v116, %v206
    %v208 = vlaneseq
    %v209 = vshrl.u32 %v208, 7
    %v210 = vsub.s32 3, %v209
    %v211 = vrot.slane %v116, %v210
    %v216 = vmul.f32 %v191, %v199
    %v217 = vmul.f32 %v192, %v203
    %v218 = vmul.f32 %v193, %v207
    %v219 = vmul.f32 %v194, %v211
    %v221 = vlaneseq
    %v222 = vshrl.u32 %v221, 7
    %v223 = vsub.s32 0, %v222
    %v224 = vrot.slane %v117, %v223
    %v225 = vlaneseq
    %v226 = vshrl.u32 %v225, 7
    %v227 = vsub.s32 1, %v226
    %v228 = vrot.slane %v117, %v227
    %v229 = vlaneseq
    %v230 = vshrl.u32 %v229, 7
    %v231 = vsub.s32 2, %v230
    %v232 = vrot.slane %v117, %v231
    %v233 = vlaneseq
    %v234 = vshrl.u32 %v233, 7
    %v235 = vsub.s32 3, %v234
    %v236 = vrot.slane %v117, %v235
    %v241 = vadd.f32 %v216, %v224
    %v242 = vadd.f32 %v217, %v228
    %v243 = vadd.f32 %v218, %v232
    %v244 = vadd.f32 %v219, %v236
    %v245 = vld [vmem:[#allocation8] sm:$0xff]
    %v246 = vld [vmem:[#allocation8 + $0x8] sm:$0xff]
    %v247 = vld [vmem:[#allocation8 + $0x10] sm:$0xff]
    %v248 = vld [vmem:[#allocation8 + $0x18] sm:$0xff]
    %v249 = vld [vmem:[#allocation8 + $0x20] sm:$0xff]
    %v250 = vld [vmem:[#allocation8 + $0x28] sm:$0xff]
    %v251 = vld [vmem:[#allocation8 + $0x30] sm:$0xff]
    %v252 = vld [vmem:[#allocation8 + $0x38] sm:$0xff]
    %v253 = vld [vmem:[#allocation8 + $0x40] sm:$0xff]
    %v254 = vld [vmem:[#allocation8 + $0x48] sm:$0xff]
    %v255 = vld [vmem:[#allocation8 + $0x50] sm:$0xff]
    %v256 = vld [vmem:[#allocation8 + $0x58] sm:$0xff]
    %v257 = vld [vmem:[#allocation8 + $0x60] sm:$0xff]
    %v258 = vld [vmem:[#allocation8 + $0x68] sm:$0xff]
    %v259 = vld [vmem:[#allocation8 + $0x70] sm:$0xff]
    %v260 = vld [vmem:[#allocation8 + $0x78] sm:$0xff]
    %v261 = vld [vmem:[#allocation8 + $0x80] sm:$0xff]
    %v262 = vld [vmem:[#allocation8 + $0x88] sm:$0xff]
    %v263 = vld [vmem:[#allocation8 + $0x90] sm:$0xff]
    %v264 = vld [vmem:[#allocation8 + $0x98] sm:$0xff]
    %v265 = vld [vmem:[#allocation8 + $0xa0] sm:$0xff]
    %v266 = vld [vmem:[#allocation8 + $0xa8] sm:$0xff]
    %v267 = vld [vmem:[#allocation8 + $0xb0] sm:$0xff]
    %v268 = vld [vmem:[#allocation8 + $0xb8] sm:$0xff]
    %v269 = vld [vmem:[#allocation8 + $0xc0] sm:$0xff]
    %v270 = vld [vmem:[#allocation8 + $0xc8] sm:$0xff]
    %v271 = vld [vmem:[#allocation8 + $0xd0] sm:$0xff]
    %v272 = vld [vmem:[#allocation8 + $0xd8] sm:$0xff]
    %v273 = vld [vmem:[#allocation8 + $0xe0] sm:$0xff]
    %v274 = vld [vmem:[#allocation8 + $0xe8] sm:$0xff]
    %v275 = vld [vmem:[#allocation8 + $0xf0] sm:$0xff]
    %v276 = vld [vmem:[#allocation8 + $0xf8] sm:$0xff]
    %v277 = vld [vmem:[#allocation8 + $0x100] sm:$0xff]
    %v278 = vld [vmem:[#allocation8 + $0x108] sm:$0xff]
    %v279 = vld [vmem:[#allocation8 + $0x110] sm:$0xff]
    %v280 = vld [vmem:[#allocation8 + $0x118] sm:$0xff]
    %v281 = vld [vmem:[#allocation8 + $0x120] sm:$0xff]
    %v282 = vld [vmem:[#allocation8 + $0x128] sm:$0xff]
    %v283 = vld [vmem:[#allocation8 + $0x130] sm:$0xff]
    %v284 = vld [vmem:[#allocation8 + $0x138] sm:$0xff]
    %v285 = vld [vmem:[#allocation8 + $0x140] sm:$0xff]
    %v286 = vld [vmem:[#allocation8 + $0x148] sm:$0xff]
    %v287 = vld [vmem:[#allocation8 + $0x150] sm:$0xff]
    %v288 = vld [vmem:[#allocation8 + $0x158] sm:$0xff]
    %v289 = vld [vmem:[#allocation8 + $0x160] sm:$0xff]
    %v290 = vld [vmem:[#allocation8 + $0x168] sm:$0xff]
    %v291 = vld [vmem:[#allocation8 + $0x170] sm:$0xff]
    %v292 = vld [vmem:[#allocation8 + $0x178] sm:$0xff]
    %v293 = vld [vmem:[#allocation8 + $0x180] sm:$0xff]
    %v294 = vld [vmem:[#allocation8 + $0x188] sm:$0xff]
    %v295 = vld [vmem:[#allocation8 + $0x190] sm:$0xff]
    %v296 = vld [vmem:[#allocation8 + $0x198] sm:$0xff]
    %v297 = vld [vmem:[#allocation8 + $0x1a0] sm:$0xff]
    %v298 = vld [vmem:[#allocation8 + $0x1a8] sm:$0xff]
    %v299 = vld [vmem:[#allocation8 + $0x1b0] sm:$0xff]
    %v300 = vld [vmem:[#allocation8 + $0x1b8] sm:$0xff]
    %v301 = vld [vmem:[#allocation8 + $0x1c0] sm:$0xff]
    %v302 = vld [vmem:[#allocation8 + $0x1c8] sm:$0xff]
    %v303 = vld [vmem:[#allocation8 + $0x1d0] sm:$0xff]
    %v304 = vld [vmem:[#allocation8 + $0x1d8] sm:$0xff]
    %v305 = vld [vmem:[#allocation8 + $0x1e0] sm:$0xff]
    %v306 = vld [vmem:[#allocation8 + $0x1e8] sm:$0xff]
    %v307 = vld [vmem:[#allocation8 + $0x1f0] sm:$0xff]
    %v308 = vld [vmem:[#allocation8 + $0x1f8] sm:$0xff]
    %v309 = vld [vmem:[#allocation8 + $0x200] sm:$0xff]
    %v310 = vld [vmem:[#allocation8 + $0x208] sm:$0xff]
    %v311 = vld [vmem:[#allocation8 + $0x210] sm:$0xff]
    %v312 = vld [vmem:[#allocation8 + $0x218] sm:$0xff]
    %v313 = vld [vmem:[#allocation8 + $0x220] sm:$0xff]
    %v314 = vld [vmem:[#allocation8 + $0x228] sm:$0xff]
    %v315 = vld [vmem:[#allocation8 + $0x230] sm:$0xff]
    %v316 = vld [vmem:[#allocation8 + $0x238] sm:$0xff]
    %v317 = vld [vmem:[#allocation8 + $0x240] sm:$0xff]
    %v318 = vld [vmem:[#allocation8 + $0x248] sm:$0xff]
    %v319 = vld [vmem:[#allocation8 + $0x250] sm:$0xff]
    %v320 = vld [vmem:[#allocation8 + $0x258] sm:$0xff]
    %v321 = vld [vmem:[#allocation8 + $0x260] sm:$0xff]
    %v322 = vld [vmem:[#allocation8 + $0x268] sm:$0xff]
    %v323 = vld [vmem:[#allocation8 + $0x270] sm:$0xff]
    %v324 = vld [vmem:[#allocation8 + $0x278] sm:$0xff]
    %v325 = vld [vmem:[#allocation8 + $0x280] sm:$0xff]
    %v326 = vld [vmem:[#allocation8 + $0x288] sm:$0xff]
    %v327 = vld [vmem:[#allocation8 + $0x290] sm:$0xff]
    %v328 = vld [vmem:[#allocation8 + $0x298] sm:$0xff]
    %v329 = vld [vmem:[#allocation8 + $0x2a0] sm:$0xff]
    %v330 = vld [vmem:[#allocation8 + $0x2a8] sm:$0xff]
    %v331 = vld [vmem:[#allocation8 + $0x2b0] sm:$0xff]
    %v332 = vld [vmem:[#allocation8 + $0x2b8] sm:$0xff]
    %v333 = vld [vmem:[#allocation8 + $0x2c0] sm:$0xff]
    %v334 = vld [vmem:[#allocation8 + $0x2c8] sm:$0xff]
    %v335 = vld [vmem:[#allocation8 + $0x2d0] sm:$0xff]
    %v336 = vld [vmem:[#allocation8 + $0x2d8] sm:$0xff]
    %v337 = vld [vmem:[#allocation8 + $0x2e0] sm:$0xff]
    %v338 = vld [vmem:[#allocation8 + $0x2e8] sm:$0xff]
    %v339 = vld [vmem:[#allocation8 + $0x2f0] sm:$0xff]
    %v340 = vld [vmem:[#allocation8 + $0x2f8] sm:$0xff]
    %v341 = vld [vmem:[#allocation8 + $0x300] sm:$0xff]
    %v342 = vld [vmem:[#allocation8 + $0x308] sm:$0xff]
    %v343 = vld [vmem:[#allocation8 + $0x310] sm:$0xff]
    %v344 = vld [vmem:[#allocation8 + $0x318] sm:$0xff]
    %v345 = vld [vmem:[#allocation8 + $0x320] sm:$0xff]
    %v346 = vld [vmem:[#allocation8 + $0x328] sm:$0xff]
    %v347 = vld [vmem:[#allocation8 + $0x330] sm:$0xff]
    %v348 = vld [vmem:[#allocation8 + $0x338] sm:$0xff]
    %v349 = vld [vmem:[#allocation8 + $0x340] sm:$0xff]
    %v350 = vld [vmem:[#allocation8 + $0x348] sm:$0xff]
    %v351 = vld [vmem:[#allocation8 + $0x350] sm:$0xff]
    %v352 = vld [vmem:[#allocation8 + $0x358] sm:$0xff]
    %v353 = vld [vmem:[#allocation8 + $0x360] sm:$0xff]
    %v354 = vld [vmem:[#allocation8 + $0x368] sm:$0xff]
    %v355 = vld [vmem:[#allocation8 + $0x370] sm:$0xff]
    %v356 = vld [vmem:[#allocation8 + $0x378] sm:$0xff]
    %v357 = vld [vmem:[#allocation8 + $0x380] sm:$0xff]
    %v358 = vld [vmem:[#allocation8 + $0x388] sm:$0xff]
    %v359 = vld [vmem:[#allocation8 + $0x390] sm:$0xff]
    %v360 = vld [vmem:[#allocation8 + $0x398] sm:$0xff]
    %v361 = vld [vmem:[#allocation8 + $0x3a0] sm:$0xff]
    %v362 = vld [vmem:[#allocation8 + $0x3a8] sm:$0xff]
    %v363 = vld [vmem:[#allocation8 + $0x3b0] sm:$0xff]
    %v364 = vld [vmem:[#allocation8 + $0x3b8] sm:$0xff]
    %v365 = vld [vmem:[#allocation8 + $0x3c0] sm:$0xff]
    %v366 = vld [vmem:[#allocation8 + $0x3c8] sm:$0xff]
    %v367 = vld [vmem:[#allocation8 + $0x3d0] sm:$0xff]
    %v368 = vld [vmem:[#allocation8 + $0x3d8] sm:$0xff]
    %v369 = vld [vmem:[#allocation8 + $0x3e0] sm:$0xff]
    %v370 = vld [vmem:[#allocation8 + $0x3e8] sm:$0xff]
    %v371 = vld [vmem:[#allocation8 + $0x3f0] sm:$0xff]
    %v372 = vld [vmem:[#allocation8 + $0x3f8] sm:$0xff]
    %v373 = vld [vmem:[#allocation8 + $0x400] sm:$0xff]
    %v374 = vld [vmem:[#allocation8 + $0x408] sm:$0xff]
    %v375 = vld [vmem:[#allocation8 + $0x410] sm:$0xff]
    %v376 = vld [vmem:[#allocation8 + $0x418] sm:$0xff]
    %v377 = vld [vmem:[#allocation8 + $0x420] sm:$0xff]
    %v378 = vld [vmem:[#allocation8 + $0x428] sm:$0xff]
    %v379 = vld [vmem:[#allocation8 + $0x430] sm:$0xff]
    %v380 = vld [vmem:[#allocation8 + $0x438] sm:$0xff]
    %v381 = vld [vmem:[#allocation8 + $0x440] sm:$0xff]
    %v382 = vld [vmem:[#allocation8 + $0x448] sm:$0xff]
    %v383 = vld [vmem:[#allocation8 + $0x450] sm:$0xff]
    %v384 = vld [vmem:[#allocation8 + $0x458] sm:$0xff]
    %v385 = vld [vmem:[#allocation8 + $0x460] sm:$0xff]
    %v386 = vld [vmem:[#allocation8 + $0x468] sm:$0xff]
    %v387 = vld [vmem:[#allocation8 + $0x470] sm:$0xff]
    %v388 = vld [vmem:[#allocation8 + $0x478] sm:$0xff]
    %v389 = vld [vmem:[#allocation8 + $0x480] sm:$0xff]
    %v390 = vld [vmem:[#allocation8 + $0x488] sm:$0xff]
    %v391 = vld [vmem:[#allocation8 + $0x490] sm:$0xff]
    %v392 = vld [vmem:[#allocation8 + $0x498] sm:$0xff]
    %v393 = vld [vmem:[#allocation8 + $0x4a0] sm:$0xff]
    %v394 = vld [vmem:[#allocation8 + $0x4a8] sm:$0xff]
    %v395 = vld [vmem:[#allocation8 + $0x4b0] sm:$0xff]
    %v396 = vld [vmem:[#allocation8 + $0x4b8] sm:$0xff]
    %v397 = vld [vmem:[#allocation8 + $0x4c0] sm:$0xff]
    %v398 = vld [vmem:[#allocation8 + $0x4c8] sm:$0xff]
    %v399 = vld [vmem:[#allocation8 + $0x4d0] sm:$0xff]
    %v400 = vld [vmem:[#allocation8 + $0x4d8] sm:$0xff]
    %v401 = vld [vmem:[#allocation8 + $0x4e0] sm:$0xff]
    %v402 = vld [vmem:[#allocation8 + $0x4e8] sm:$0xff]
    %v403 = vld [vmem:[#allocation8 + $0x4f0] sm:$0xff]
    %v404 = vld [vmem:[#allocation8 + $0x4f8] sm:$0xff]
    %v405 = vld [vmem:[#allocation8 + $0x500] sm:$0xff]
    %v406 = vld [vmem:[#allocation8 + $0x508] sm:$0xff]
    %v407 = vld [vmem:[#allocation8 + $0x510] sm:$0xff]
    %v408 = vld [vmem:[#allocation8 + $0x518] sm:$0xff]
    %v409 = vld [vmem:[#allocation8 + $0x520] sm:$0xff]
    %v410 = vld [vmem:[#allocation8 + $0x528] sm:$0xff]
    %v411 = vld [vmem:[#allocation8 + $0x530] sm:$0xff]
    %v412 = vld [vmem:[#allocation8 + $0x538] sm:$0xff]
    %v413 = vld [vmem:[#allocation8 + $0x540] sm:$0xff]
    %v414 = vld [vmem:[#allocation8 + $0x548] sm:$0xff]
    %v415 = vld [vmem:[#allocation8 + $0x550] sm:$0xff]
    %v416 = vld [vmem:[#allocation8 + $0x558] sm:$0xff]
    %v417 = vld [vmem:[#allocation8 + $0x560] sm:$0xff]
    %v418 = vld [vmem:[#allocation8 + $0x568] sm:$0xff]
    %v419 = vld [vmem:[#allocation8 + $0x570] sm:$0xff]
    %v420 = vld [vmem:[#allocation8 + $0x578] sm:$0xff]
    %v421 = vld [vmem:[#allocation8 + $0x580] sm:$0xff]
    %v422 = vld [vmem:[#allocation8 + $0x588] sm:$0xff]
    %v423 = vld [vmem:[#allocation8 + $0x590] sm:$0xff]
    %v424 = vld [vmem:[#allocation8 + $0x598] sm:$0xff]
    %v425 = vld [vmem:[#allocation8 + $0x5a0] sm:$0xff]
    %v426 = vld [vmem:[#allocation8 + $0x5a8] sm:$0xff]
    %v427 = vld [vmem:[#allocation8 + $0x5b0] sm:$0xff]
    %v428 = vld [vmem:[#allocation8 + $0x5b8] sm:$0xff]
    %v429 = vld [vmem:[#allocation8 + $0x5c0] sm:$0xff]
    %v430 = vld [vmem:[#allocation8 + $0x5c8] sm:$0xff]
    %v431 = vld [vmem:[#allocation8 + $0x5d0] sm:$0xff]
    %v432 = vld [vmem:[#allocation8 + $0x5d8] sm:$0xff]
    %v433 = vld [vmem:[#allocation8 + $0x5e0] sm:$0xff]
    %v434 = vld [vmem:[#allocation8 + $0x5e8] sm:$0xff]
    %v435 = vld [vmem:[#allocation8 + $0x5f0] sm:$0xff]
    %v436 = vld [vmem:[#allocation8 + $0x5f8] sm:$0xff]
    %v437 = vld [vmem:[#allocation8 + $0x600] sm:$0xff]
    %v438 = vld [vmem:[#allocation8 + $0x608] sm:$0xff]
    %v439 = vld [vmem:[#allocation8 + $0x610] sm:$0xff]
    %v440 = vld [vmem:[#allocation8 + $0x618] sm:$0xff]
    %v441 = vld [vmem:[#allocation8 + $0x620] sm:$0xff]
    %v442 = vld [vmem:[#allocation8 + $0x628] sm:$0xff]
    %v443 = vld [vmem:[#allocation8 + $0x630] sm:$0xff]
    %v444 = vld [vmem:[#allocation8 + $0x638] sm:$0xff]
    %v445 = vld [vmem:[#allocation8 + $0x640] sm:$0xff]
    %v446 = vld [vmem:[#allocation8 + $0x648] sm:$0xff]
    %v447 = vld [vmem:[#allocation8 + $0x650] sm:$0xff]
    %v448 = vld [vmem:[#allocation8 + $0x658] sm:$0xff]
    %v449 = vld [vmem:[#allocation8 + $0x660] sm:$0xff]
    %v450 = vld [vmem:[#allocation8 + $0x668] sm:$0xff]
    %v451 = vld [vmem:[#allocation8 + $0x670] sm:$0xff]
    %v452 = vld [vmem:[#allocation8 + $0x678] sm:$0xff]
    %v453 = vld [vmem:[#allocation8 + $0x680] sm:$0xff]
    %v454 = vld [vmem:[#allocation8 + $0x688] sm:$0xff]
    %v455 = vld [vmem:[#allocation8 + $0x690] sm:$0xff]
    %v456 = vld [vmem:[#allocation8 + $0x698] sm:$0xff]
    %v457 = vld [vmem:[#allocation8 + $0x6a0] sm:$0xff]
    %v458 = vld [vmem:[#allocation8 + $0x6a8] sm:$0xff]
    %v459 = vld [vmem:[#allocation8 + $0x6b0] sm:$0xff]
    %v460 = vld [vmem:[#allocation8 + $0x6b8] sm:$0xff]
    %v461 = vld [vmem:[#allocation8 + $0x6c0] sm:$0xff]
    %v462 = vld [vmem:[#allocation8 + $0x6c8] sm:$0xff]
    %v463 = vld [vmem:[#allocation8 + $0x6d0] sm:$0xff]
    %v464 = vld [vmem:[#allocation8 + $0x6d8] sm:$0xff]
    %v465 = vld [vmem:[#allocation8 + $0x6e0] sm:$0xff]
    %v466 = vld [vmem:[#allocation8 + $0x6e8] sm:$0xff]
    %v467 = vld [vmem:[#allocation8 + $0x6f0] sm:$0xff]
    %v468 = vld [vmem:[#allocation8 + $0x6f8] sm:$0xff]
    %v469 = vld [vmem:[#allocation8 + $0x700] sm:$0xff]
    %v470 = vld [vmem:[#allocation8 + $0x708] sm:$0xff]
    %v471 = vld [vmem:[#allocation8 + $0x710] sm:$0xff]
    %v472 = vld [vmem:[#allocation8 + $0x718] sm:$0xff]
    %v473 = vld [vmem:[#allocation8 + $0x720] sm:$0xff]
    %v474 = vld [vmem:[#allocation8 + $0x728] sm:$0xff]
    %v475 = vld [vmem:[#allocation8 + $0x730] sm:$0xff]
    %v476 = vld [vmem:[#allocation8 + $0x738] sm:$0xff]
    %v477 = vld [vmem:[#allocation8 + $0x740] sm:$0xff]
    %v478 = vld [vmem:[#allocation8 + $0x748] sm:$0xff]
    %v479 = vld [vmem:[#allocation8 + $0x750] sm:$0xff]
    %v480 = vld [vmem:[#allocation8 + $0x758] sm:$0xff]
    %v481 = vld [vmem:[#allocation8 + $0x760] sm:$0xff]
    %v482 = vld [vmem:[#allocation8 + $0x768] sm:$0xff]
    %v483 = vld [vmem:[#allocation8 + $0x770] sm:$0xff]
    %v484 = vld [vmem:[#allocation8 + $0x778] sm:$0xff]
    %v485 = vld [vmem:[#allocation8 + $0x780] sm:$0xff]
    %v486 = vld [vmem:[#allocation8 + $0x788] sm:$0xff]
    %v487 = vld [vmem:[#allocation8 + $0x790] sm:$0xff]
    %v488 = vld [vmem:[#allocation8 + $0x798] sm:$0xff]
    %v489 = vld [vmem:[#allocation8 + $0x7a0] sm:$0xff]
    %v490 = vld [vmem:[#allocation8 + $0x7a8] sm:$0xff]
    %v491 = vld [vmem:[#allocation8 + $0x7b0] sm:$0xff]
    %v492 = vld [vmem:[#allocation8 + $0x7b8] sm:$0xff]
    %v493 = vld [vmem:[#allocation8 + $0x7c0] sm:$0xff]
    %v494 = vld [vmem:[#allocation8 + $0x7c8] sm:$0xff]
    %v495 = vld [vmem:[#allocation8 + $0x7d0] sm:$0xff]
    %v496 = vld [vmem:[#allocation8 + $0x7d8] sm:$0xff]
    %v497 = vld [vmem:[#allocation8 + $0x7e0] sm:$0xff]
    %v498 = vld [vmem:[#allocation8 + $0x7e8] sm:$0xff]
    %v499 = vld [vmem:[#allocation8 + $0x7f0] sm:$0xff]
    %v500 = vld [vmem:[#allocation8 + $0x7f8] sm:$0xff]
    %v501 = vld [vmem:[#allocation8 + $0x800] sm:$0xff]
    %v502 = vld [vmem:[#allocation8 + $0x808] sm:$0xff]
    %v503 = vld [vmem:[#allocation8 + $0x810] sm:$0xff]
    %v504 = vld [vmem:[#allocation8 + $0x818] sm:$0xff]
    %v505 = vld [vmem:[#allocation8 + $0x820] sm:$0xff]
    %v506 = vld [vmem:[#allocation8 + $0x828] sm:$0xff]
    %v507 = vld [vmem:[#allocation8 + $0x830] sm:$0xff]
    %v508 = vld [vmem:[#allocation8 + $0x838] sm:$0xff]
    %v509 = vld [vmem:[#allocation8 + $0x840] sm:$0xff]
    %v510 = vld [vmem:[#allocation8 + $0x848] sm:$0xff]
    %v511 = vld [vmem:[#allocation8 + $0x850] sm:$0xff]
    %v512 = vld [vmem:[#allocation8 + $0x858] sm:$0xff]
    %v513 = vld [vmem:[#allocation8 + $0x860] sm:$0xff]
    %v514 = vld [vmem:[#allocation8 + $0x868] sm:$0xff]
    %v515 = vld [vmem:[#allocation8 + $0x870] sm:$0xff]
    %v516 = vld [vmem:[#allocation8 + $0x878] sm:$0xff]
    %v517 = vld [vmem:[#allocation8 + $0x880] sm:$0xff]
    %v518 = vld [vmem:[#allocation8 + $0x888] sm:$0xff]
    %v519 = vld [vmem:[#allocation8 + $0x890] sm:$0xff]
    %v520 = vld [vmem:[#allocation8 + $0x898] sm:$0xff]
    %v521 = vld [vmem:[#allocation8 + $0x8a0] sm:$0xff]
    %v522 = vld [vmem:[#allocation8 + $0x8a8] sm:$0xff]
    %v523 = vld [vmem:[#allocation8 + $0x8b0] sm:$0xff]
    %v524 = vld [vmem:[#allocation8 + $0x8b8] sm:$0xff]
    %v525 = vld [vmem:[#allocation8 + $0x8c0] sm:$0xff]
    %v526 = vld [vmem:[#allocation8 + $0x8c8] sm:$0xff]
    %v527 = vld [vmem:[#allocation8 + $0x8d0] sm:$0xff]
    %v528 = vld [vmem:[#allocation8 + $0x8d8] sm:$0xff]
    %v529 = vld [vmem:[#allocation8 + $0x8e0] sm:$0xff]
    %v530 = vld [vmem:[#allocation8 + $0x8e8] sm:$0xff]
    %v531 = vld [vmem:[#allocation8 + $0x8f0] sm:$0xff]
    %v532 = vld [vmem:[#allocation8 + $0x8f8] sm:$0xff]
    %v533 = vld [vmem:[#allocation8 + $0x900] sm:$0xff]
    %v534 = vld [vmem:[#allocation8 + $0x908] sm:$0xff]
    %v535 = vld [vmem:[#allocation8 + $0x910] sm:$0xff]
    %v536 = vld [vmem:[#allocation8 + $0x918] sm:$0xff]
    %v537 = vld [vmem:[#allocation8 + $0x920] sm:$0xff]
    %v538 = vld [vmem:[#allocation8 + $0x928] sm:$0xff]
    %v539 = vld [vmem:[#allocation8 + $0x930] sm:$0xff]
    %v540 = vld [vmem:[#allocation8 + $0x938] sm:$0xff]
    %v541 = vld [vmem:[#allocation8 + $0x940] sm:$0xff]
    %v542 = vld [vmem:[#allocation8 + $0x948] sm:$0xff]
    %v543 = vld [vmem:[#allocation8 + $0x950] sm:$0xff]
    %v544 = vld [vmem:[#allocation8 + $0x958] sm:$0xff]
    %v545 = vld [vmem:[#allocation8 + $0x960] sm:$0xff]
    %v546 = vld [vmem:[#allocation8 + $0x968] sm:$0xff]
    %v547 = vld [vmem:[#allocation8 + $0x970] sm:$0xff]
    %v548 = vld [vmem:[#allocation8 + $0x978] sm:$0xff]
    %v549 = vld [vmem:[#allocation8 + $0x980] sm:$0xff]
    %v550 = vld [vmem:[#allocation8 + $0x988] sm:$0xff]
    %v551 = vld [vmem:[#allocation8 + $0x990] sm:$0xff]
    %v552 = vld [vmem:[#allocation8 + $0x998] sm:$0xff]
    %v553 = vld [vmem:[#allocation8 + $0x9a0] sm:$0xff]
    %v554 = vld [vmem:[#allocation8 + $0x9a8] sm:$0xff]
    %v555 = vld [vmem:[#allocation8 + $0x9b0] sm:$0xff]
    %v556 = vld [vmem:[#allocation8 + $0x9b8] sm:$0xff]
    %v557 = vld [vmem:[#allocation8 + $0x9c0] sm:$0xff]
    %v558 = vld [vmem:[#allocation8 + $0x9c8] sm:$0xff]
    %v559 = vld [vmem:[#allocation8 + $0x9d0] sm:$0xff]
    %v560 = vld [vmem:[#allocation8 + $0x9d8] sm:$0xff]
    %v561 = vld [vmem:[#allocation8 + $0x9e0] sm:$0xff]
    %v562 = vld [vmem:[#allocation8 + $0x9e8] sm:$0xff]
    %v563 = vld [vmem:[#allocation8 + $0x9f0] sm:$0xff]
    %v564 = vld [vmem:[#allocation8 + $0x9f8] sm:$0xff]
    %v565 = vld [vmem:[#allocation8 + $0xa00] sm:$0xff]
    %v566 = vld [vmem:[#allocation8 + $0xa08] sm:$0xff]
    %v567 = vld [vmem:[#allocation8 + $0xa10] sm:$0xff]
    %v568 = vld [vmem:[#allocation8 + $0xa18] sm:$0xff]
    %v569 = vld [vmem:[#allocation8 + $0xa20] sm:$0xff]
    %v570 = vld [vmem:[#allocation8 + $0xa28] sm:$0xff]
    %v571 = vld [vmem:[#allocation8 + $0xa30] sm:$0xff]
    %v572 = vld [vmem:[#allocation8 + $0xa38] sm:$0xff]
    %v573 = vld [vmem:[#allocation8 + $0xa40] sm:$0xff]
    %v574 = vld [vmem:[#allocation8 + $0xa48] sm:$0xff]
    %v575 = vld [vmem:[#allocation8 + $0xa50] sm:$0xff]
    %v576 = vld [vmem:[#allocation8 + $0xa58] sm:$0xff]
    %v577 = vld [vmem:[#allocation8 + $0xa60] sm:$0xff]
    %v578 = vld [vmem:[#allocation8 + $0xa68] sm:$0xff]
    %v579 = vld [vmem:[#allocation8 + $0xa70] sm:$0xff]
    %v580 = vld [vmem:[#allocation8 + $0xa78] sm:$0xff]
    %v581 = vld [vmem:[#allocation8 + $0xa80] sm:$0xff]
    %v582 = vld [vmem:[#allocation8 + $0xa88] sm:$0xff]
    %v583 = vld [vmem:[#allocation8 + $0xa90] sm:$0xff]
    %v584 = vld [vmem:[#allocation8 + $0xa98] sm:$0xff]
    %v585 = vld [vmem:[#allocation8 + $0xaa0] sm:$0xff]
    %v586 = vld [vmem:[#allocation8 + $0xaa8] sm:$0xff]
    %v587 = vld [vmem:[#allocation8 + $0xab0] sm:$0xff]
    %v588 = vld [vmem:[#allocation8 + $0xab8] sm:$0xff]
    %v589 = vld [vmem:[#allocation8 + $0xac0] sm:$0xff]
    %v590 = vld [vmem:[#allocation8 + $0xac8] sm:$0xff]
    %v591 = vld [vmem:[#allocation8 + $0xad0] sm:$0xff]
    %v592 = vld [vmem:[#allocation8 + $0xad8] sm:$0xff]
    %v593 = vld [vmem:[#allocation8 + $0xae0] sm:$0xff]
    %v594 = vld [vmem:[#allocation8 + $0xae8] sm:$0xff]
    %v595 = vld [vmem:[#allocation8 + $0xaf0] sm:$0xff]
    %v596 = vld [vmem:[#allocation8 + $0xaf8] sm:$0xff]
    %v597 = vld [vmem:[#allocation8 + $0xb00] sm:$0xff]
    %v598 = vld [vmem:[#allocation8 + $0xb08] sm:$0xff]
    %v599 = vld [vmem:[#allocation8 + $0xb10] sm:$0xff]
    %v600 = vld [vmem:[#allocation8 + $0xb18] sm:$0xff]
    %v601 = vld [vmem:[#allocation8 + $0xb20] sm:$0xff]
    %v602 = vld [vmem:[#allocation8 + $0xb28] sm:$0xff]
    %v603 = vld [vmem:[#allocation8 + $0xb30] sm:$0xff]
    %v604 = vld [vmem:[#allocation8 + $0xb38] sm:$0xff]
    %v605 = vld [vmem:[#allocation8 + $0xb40] sm:$0xff]
    %v606 = vld [vmem:[#allocation8 + $0xb48] sm:$0xff]
    %v607 = vld [vmem:[#allocation8 + $0xb50] sm:$0xff]
    %v608 = vld [vmem:[#allocation8 + $0xb58] sm:$0xff]
    %v609 = vld [vmem:[#allocation8 + $0xb60] sm:$0xff]
    %v610 = vld [vmem:[#allocation8 + $0xb68] sm:$0xff]
    %v611 = vld [vmem:[#allocation8 + $0xb70] sm:$0xff]
    %v612 = vld [vmem:[#allocation8 + $0xb78] sm:$0xff]
    %v613 = vld [vmem:[#allocation8 + $0xb80] sm:$0xff]
    %v614 = vld [vmem:[#allocation8 + $0xb88] sm:$0xff]
    %v615 = vld [vmem:[#allocation8 + $0xb90] sm:$0xff]
    %v616 = vld [vmem:[#allocation8 + $0xb98] sm:$0xff]
    %v617 = vld [vmem:[#allocation8 + $0xba0] sm:$0xff]
    %v618 = vld [vmem:[#allocation8 + $0xba8] sm:$0xff]
    %v619 = vld [vmem:[#allocation8 + $0xbb0] sm:$0xff]
    %v620 = vld [vmem:[#allocation8 + $0xbb8] sm:$0xff]
    %v621 = vld [vmem:[#allocation8 + $0xbc0] sm:$0xff]
    %v622 = vld [vmem:[#allocation8 + $0xbc8] sm:$0xff]
    %v623 = vld [vmem:[#allocation8 + $0xbd0] sm:$0xff]
    %v624 = vld [vmem:[#allocation8 + $0xbd8] sm:$0xff]
    %v625 = vld [vmem:[#allocation8 + $0xbe0] sm:$0xff]
    %v626 = vld [vmem:[#allocation8 + $0xbe8] sm:$0xff]
    %v627 = vld [vmem:[#allocation8 + $0xbf0] sm:$0xff]
    %v628 = vld [vmem:[#allocation8 + $0xbf8] sm:$0xff]
    %629 = vmatprep.subr.mxu0 %v336
    %630 = vmatpush1.msra.mxu0 %v335
    %631 = vmatprep.subr.mxu0 %v330
    %632 = vmatpush1.msra.mxu0 %v329
    %633 = vmatprep.subr.mxu0 %v324
    %634 = vmatpush1.msra.mxu0 %v323
    %635 = vmatprep.subr.mxu0 %v318
    %636 = vmatpush1.msra.mxu0 %v317
    %637 = vmatprep.subr.mxu0 %v312
    %638 = vmatpush1.msra.mxu0 %v311
    %639 = vmatprep.subr.mxu0 %v306
    %640 = vmatpush1.msra.mxu0 %v305
    %641 = vmatprep.subr.mxu0 %v300
    %642 = vmatpush1.msra.mxu0 %v299
    %643 = vmatprep.subr.mxu0 %v294
    %644 = vmatpush1.msra.mxu0 %v293
    %645 = vmatprep.subr.mxu0 %v288
    %646 = vmatpush1.msra.mxu0 %v287
    %647 = vmatprep.subr.mxu0 %v282
    %648 = vmatpush1.msra.mxu0 %v281
    %649 = vmatprep.subr.mxu0 %v276
    %650 = vmatpush1.msra.mxu0 %v275
    %651 = vmatprep.subr.mxu0 %v270
    %652 = vmatpush1.msra.mxu0 %v269
    %653 = vmatprep.subr.mxu0 %v264
    %654 = vmatpush1.msra.mxu0 %v263
    %655 = vmatprep.subr.mxu0 %v258
    %656 = vmatpush1.msra.mxu0 %v257
    %657 = vmatprep.subr.mxu0 %v252
    %658 = vmatpush1.msra.mxu0 %v251
    %659 = vmatprep.subr.mxu0 %v246
    %660 = vmatpush1.msra.mxu0 %v245
    %661 = vmatprep.subr.mxu0 %v432
    %662 = vmatpush2.msra.mxu0 %v431
    %663 = vmatprep.subr.mxu0 %v426
    %664 = vmatpush2.msra.mxu0 %v425
    %665 = vmatprep.subr.mxu0 %v420
    %666 = vmatpush2.msra.mxu0 %v419
    %667 = vmatprep.subr.mxu0 %v414
    %668 = vmatpush2.msra.mxu0 %v413
    %669 = vmatprep.subr.mxu0 %v408
    %670 = vmatpush2.msra.mxu0 %v407
    %671 = vmatprep.subr.mxu0 %v402
    %672 = vmatpush2.msra.mxu0 %v401
    %673 = vmatprep.subr.mxu0 %v396
    %674 = vmatpush2.msra.mxu0 %v395
    %675 = vmatprep.subr.mxu0 %v390
    %676 = vmatpush2.msra.mxu0 %v389
    %677 = vmatprep.subr.mxu0 %v384
    %678 = vmatpush2.msra.mxu0 %v383
    %679 = vmatprep.subr.mxu0 %v378
    %680 = vmatpush2.msra.mxu0 %v377
    %681 = vmatprep.subr.mxu0 %v372
    %682 = vmatpush2.msra.mxu0 %v371
    %683 = vmatprep.subr.mxu0 %v366
    %684 = vmatpush2.msra.mxu0 %v365
    %685 = vmatprep.subr.mxu0 %v360
    %686 = vmatpush2.msra.mxu0 %v359
    %687 = vmatprep.subr.mxu0 %v354
    %688 = vmatpush2.msra.mxu0 %v353
    %689 = vmatprep.subr.mxu0 %v348
    %690 = vmatpush2.msra.mxu0 %v347
    %691 = vmatprep.subr.mxu0 %v342
    %692 = vmatpush2.msra.mxu0 %v341
    %693 = vmatprep.mubr.f32.mxu0 %v242
    %694 = vmatmul.mubr.f32.gmra.mxu0 %v241
    %v695 = vpop.f32.mrf.mxu0
    %v696 = vadd.f32 0.0, %v695
    %v697 = vpop.f32.mrf.mxu0
    %v698 = vadd.f32 0.0, %v697
    %699 = vdwg.mxu0
    %700 = vmatprep.subr.mxu0 %v528
    %701 = vmatpush1.msra.mxu0 %v527
    %702 = vmatprep.subr.mxu0 %v522
    %703 = vmatpush1.msra.mxu0 %v521
    %704 = vmatprep.subr.mxu0 %v516
    %705 = vmatpush1.msra.mxu0 %v515
    %706 = vmatprep.subr.mxu0 %v510
    %707 = vmatpush1.msra.mxu0 %v509
    %708 = vmatprep.subr.mxu0 %v504
    %709 = vmatpush1.msra.mxu0 %v503
    %710 = vmatprep.subr.mxu0 %v498
    %711 = vmatpush1.msra.mxu0 %v497
    %712 = vmatprep.subr.mxu0 %v492
    %713 = vmatpush1.msra.mxu0 %v491
    %714 = vmatprep.subr.mxu0 %v486
    %715 = vmatpush1.msra.mxu0 %v485
    %716 = vmatprep.subr.mxu0 %v480
    %717 = vmatpush1.msra.mxu0 %v479
    %718 = vmatprep.subr.mxu0 %v474
    %719 = vmatpush1.msra.mxu0 %v473
    %720 = vmatprep.subr.mxu0 %v468
    %721 = vmatpush1.msra.mxu0 %v467
    %722 = vmatprep.subr.mxu0 %v462
    %723 = vmatpush1.msra.mxu0 %v461
    %724 = vmatprep.subr.mxu0 %v456
    %725 = vmatpush1.msra.mxu0 %v455
    %726 = vmatprep.subr.mxu0 %v450
    %727 = vmatpush1.msra.mxu0 %v449
    %728 = vmatprep.subr.mxu0 %v444
    %729 = vmatpush1.msra.mxu0 %v443
    %730 = vmatprep.subr.mxu0 %v438
    %731 = vmatpush1.msra.mxu0 %v437
    %732 = vmatprep.subr.mxu0 %v624
    %733 = vmatpush2.msra.mxu0 %v623
    %734 = vmatprep.subr.mxu0 %v618
    %735 = vmatpush2.msra.mxu0 %v617
    %736 = vmatprep.subr.mxu0 %v612
    %737 = vmatpush2.msra.mxu0 %v611
    %738 = vmatprep.subr.mxu0 %v606
    %739 = vmatpush2.msra.mxu0 %v605
    %740 = vmatprep.subr.mxu0 %v600
    %741 = vmatpush2.msra.mxu0 %v599
    %742 = vmatprep.subr.mxu0 %v594
    %743 = vmatpush2.msra.mxu0 %v593
    %744 = vmatprep.subr.mxu0 %v588
    %745 = vmatpush2.msra.mxu0 %v587
    %746 = vmatprep.subr.mxu0 %v582
    %747 = vmatpush2.msra.mxu0 %v581
    %748 = vmatprep.subr.mxu0 %v576
    %749 = vmatpush2.msra.mxu0 %v575
    %750 = vmatprep.subr.mxu0 %v570
    %751 = vmatpush2.msra.mxu0 %v569
    %752 = vmatprep.subr.mxu0 %v564
    %753 = vmatpush2.msra.mxu0 %v563
    %754 = vmatprep.subr.mxu0 %v558
    %755 = vmatpush2.msra.mxu0 %v557
    %756 = vmatprep.subr.mxu0 %v552
    %757 = vmatpush2.msra.mxu0 %v551
    %758 = vmatprep.subr.mxu0 %v546
    %759 = vmatpush2.msra.mxu0 %v545
    %760 = vmatprep.subr.mxu0 %v540
    %761 = vmatpush2.msra.mxu0 %v539
    %762 = vmatprep.subr.mxu0 %v534
    %763 = vmatpush2.msra.mxu0 %v533
    %764 = vmatprep.mubr.f32.mxu0 %v244
    %765 = vmatmul.mubr.f32.gmra.mxu0 %v243
    %v766 = vpop.f32.mrf.mxu0
    %v767 = vadd.f32 %v696, %v766
    %v768 = vpop.f32.mrf.mxu0
    %v769 = vadd.f32 %v698, %v768
    %770 = vdwg.mxu0
    %771 = vmatprep.subr.mxu0 %v338
    %772 = vmatpush1.msra.mxu0 %v337
    %773 = vmatprep.subr.mxu0 %v332
    %774 = vmatpush1.msra.mxu0 %v331
    %775 = vmatprep.subr.mxu0 %v326
    %776 = vmatpush1.msra.mxu0 %v325
    %777 = vmatprep.subr.mxu0 %v320
    %778 = vmatpush1.msra.mxu0 %v319
    %779 = vmatprep.subr.mxu0 %v314
    %780 = vmatpush1.msra.mxu0 %v313
    %781 = vmatprep.subr.mxu0 %v308
    %782 = vmatpush1.msra.mxu0 %v307
    %783 = vmatprep.subr.mxu0 %v302
    %784 = vmatpush1.msra.mxu0 %v301
    %785 = vmatprep.subr.mxu0 %v296
    %786 = vmatpush1.msra.mxu0 %v295
    %787 = vmatprep.subr.mxu0 %v290
    %788 = vmatpush1.msra.mxu0 %v289
    %789 = vmatprep.subr.mxu0 %v284
    %790 = vmatpush1.msra.mxu0 %v283
    %791 = vmatprep.subr.mxu0 %v278
    %792 = vmatpush1.msra.mxu0 %v277
    %793 = vmatprep.subr.mxu0 %v272
    %794 = vmatpush1.msra.mxu0 %v271
    %795 = vmatprep.subr.mxu0 %v266
    %796 = vmatpush1.msra.mxu0 %v265
    %797 = vmatprep.subr.mxu0 %v260
    %798 = vmatpush1.msra.mxu0 %v259
    %799 = vmatprep.subr.mxu0 %v254
    %800 = vmatpush1.msra.mxu0 %v253
    %801 = vmatprep.subr.mxu0 %v248
    %802 = vmatpush1.msra.mxu0 %v247
    %803 = vmatprep.subr.mxu0 %v434
    %804 = vmatpush2.msra.mxu0 %v433
    %805 = vmatprep.subr.mxu0 %v428
    %806 = vmatpush2.msra.mxu0 %v427
    %807 = vmatprep.subr.mxu0 %v422
    %808 = vmatpush2.msra.mxu0 %v421
    %809 = vmatprep.subr.mxu0 %v416
    %810 = vmatpush2.msra.mxu0 %v415
    %811 = vmatprep.subr.mxu0 %v410
    %812 = vmatpush2.msra.mxu0 %v409
    %813 = vmatprep.subr.mxu0 %v404
    %814 = vmatpush2.msra.mxu0 %v403
    %815 = vmatprep.subr.mxu0 %v398
    %816 = vmatpush2.msra.mxu0 %v397
    %817 = vmatprep.subr.mxu0 %v392
    %818 = vmatpush2.msra.mxu0 %v391
    %819 = vmatprep.subr.mxu0 %v386
    %820 = vmatpush2.msra.mxu0 %v385
    %821 = vmatprep.subr.mxu0 %v380
    %822 = vmatpush2.msra.mxu0 %v379
    %823 = vmatprep.subr.mxu0 %v374
    %824 = vmatpush2.msra.mxu0 %v373
    %825 = vmatprep.subr.mxu0 %v368
    %826 = vmatpush2.msra.mxu0 %v367
    %827 = vmatprep.subr.mxu0 %v362
    %828 = vmatpush2.msra.mxu0 %v361
    %829 = vmatprep.subr.mxu0 %v356
    %830 = vmatpush2.msra.mxu0 %v355
    %831 = vmatprep.subr.mxu0 %v350
    %832 = vmatpush2.msra.mxu0 %v349
    %833 = vmatprep.subr.mxu0 %v344
    %834 = vmatpush2.msra.mxu0 %v343
    %835 = vmatprep.mubr.f32.mxu0 %v242
    %836 = vmatmul.mubr.f32.gmra.mxu0 %v241
    %v837 = vpop.f32.mrf.mxu0
    %v838 = vadd.f32 0.0, %v837
    %v839 = vpop.f32.mrf.mxu0
    %v840 = vadd.f32 0.0, %v839
    %841 = vdwg.mxu0
    %842 = vmatprep.subr.mxu0 %v530
    %843 = vmatpush1.msra.mxu0 %v529
    %844 = vmatprep.subr.mxu0 %v524
    %845 = vmatpush1.msra.mxu0 %v523
    %846 = vmatprep.subr.mxu0 %v518
    %847 = vmatpush1.msra.mxu0 %v517
    %848 = vmatprep.subr.mxu0 %v512
    %849 = vmatpush1.msra.mxu0 %v511
    %850 = vmatprep.subr.mxu0 %v506
    %851 = vmatpush1.msra.mxu0 %v505
    %852 = vmatprep.subr.mxu0 %v500
    %853 = vmatpush1.msra.mxu0 %v499
    %854 = vmatprep.subr.mxu0 %v494
    %855 = vmatpush1.msra.mxu0 %v493
    %856 = vmatprep.subr.mxu0 %v488
    %857 = vmatpush1.msra.mxu0 %v487
    %858 = vmatprep.subr.mxu0 %v482
    %859 = vmatpush1.msra.mxu0 %v481
    %860 = vmatprep.subr.mxu0 %v476
    %861 = vmatpush1.msra.mxu0 %v475
    %862 = vmatprep.subr.mxu0 %v470
    %863 = vmatpush1.msra.mxu0 %v469
    %864 = vmatprep.subr.mxu0 %v464
    %865 = vmatpush1.msra.mxu0 %v463
    %866 = vmatprep.subr.mxu0 %v458
    %867 = vmatpush1.msra.mxu0 %v457
    %868 = vmatprep.subr.mxu0 %v452
    %869 = vmatpush1.msra.mxu0 %v451
    %870 = vmatprep.subr.mxu0 %v446
    %871 = vmatpush1.msra.mxu0 %v445
    %872 = vmatprep.subr.mxu0 %v440
    %873 = vmatpush1.msra.mxu0 %v439
    %874 = vmatprep.subr.mxu0 %v626
    %875 = vmatpush2.msra.mxu0 %v625
    %876 = vmatprep.subr.mxu0 %v620
    %877 = vmatpush2.msra.mxu0 %v619
    %878 = vmatprep.subr.mxu0 %v614
    %879 = vmatpush2.msra.mxu0 %v613
    %880 = vmatprep.subr.mxu0 %v608
    %881 = vmatpush2.msra.mxu0 %v607
    %882 = vmatprep.subr.mxu0 %v602
    %883 = vmatpush2.msra.mxu0 %v601
    %884 = vmatprep.subr.mxu0 %v596
    %885 = vmatpush2.msra.mxu0 %v595
    %886 = vmatprep.subr.mxu0 %v590
    %887 = vmatpush2.msra.mxu0 %v589
    %888 = vmatprep.subr.mxu0 %v584
    %889 = vmatpush2.msra.mxu0 %v583
    %890 = vmatprep.subr.mxu0 %v578
    %891 = vmatpush2.msra.mxu0 %v577
    %892 = vmatprep.subr.mxu0 %v572
    %893 = vmatpush2.msra.mxu0 %v571
    %894 = vmatprep.subr.mxu0 %v566
    %895 = vmatpush2.msra.mxu0 %v565
    %896 = vmatprep.subr.mxu0 %v560
    %897 = vmatpush2.msra.mxu0 %v559
    %898 = vmatprep.subr.mxu0 %v554
    %899 = vmatpush2.msra.mxu0 %v553
    %900 = vmatprep.subr.mxu0 %v548
    %901 = vmatpush2.msra.mxu0 %v547
    %902 = vmatprep.subr.mxu0 %v542
    %903 = vmatpush2.msra.mxu0 %v541
    %904 = vmatprep.subr.mxu0 %v536
    %905 = vmatpush2.msra.mxu0 %v535
    %906 = vmatprep.mubr.f32.mxu0 %v244
    %907 = vmatmul.mubr.f32.gmra.mxu0 %v243
    %v908 = vpop.f32.mrf.mxu0
    %v909 = vadd.f32 %v838, %v908
    %v910 = vpop.f32.mrf.mxu0
    %v911 = vadd.f32 %v840, %v910
    %912 = vdwg.mxu0
    %913 = vmatprep.subr.mxu0 %v340
    %914 = vmatpush1.msra.mxu0 %v339
    %915 = vmatprep.subr.mxu0 %v334
    %916 = vmatpush1.msra.mxu0 %v333
    %917 = vmatprep.subr.mxu0 %v328
    %918 = vmatpush1.msra.mxu0 %v327
    %919 = vmatprep.subr.mxu0 %v322
    %920 = vmatpush1.msra.mxu0 %v321
    %921 = vmatprep.subr.mxu0 %v316
    %922 = vmatpush1.msra.mxu0 %v315
    %923 = vmatprep.subr.mxu0 %v310
    %924 = vmatpush1.msra.mxu0 %v309
    %925 = vmatprep.subr.mxu0 %v304
    %926 = vmatpush1.msra.mxu0 %v303
    %927 = vmatprep.subr.mxu0 %v298
    %928 = vmatpush1.msra.mxu0 %v297
    %929 = vmatprep.subr.mxu0 %v292
    %930 = vmatpush1.msra.mxu0 %v291
    %931 = vmatprep.subr.mxu0 %v286
    %932 = vmatpush1.msra.mxu0 %v285
    %933 = vmatprep.subr.mxu0 %v280
    %934 = vmatpush1.msra.mxu0 %v279
    %935 = vmatprep.subr.mxu0 %v274
    %936 = vmatpush1.msra.mxu0 %v273
    %937 = vmatprep.subr.mxu0 %v268
    %938 = vmatpush1.msra.mxu0 %v267
    %939 = vmatprep.subr.mxu0 %v262
    %940 = vmatpush1.msra.mxu0 %v261
    %941 = vmatprep.subr.mxu0 %v256
    %942 = vmatpush1.msra.mxu0 %v255
    %943 = vmatprep.subr.mxu0 %v250
    %944 = vmatpush1.msra.mxu0 %v249
    %945 = vmatprep.subr.mxu0 %v436
    %946 = vmatpush2.msra.mxu0 %v435
    %947 = vmatprep.subr.mxu0 %v430
    %948 = vmatpush2.msra.mxu0 %v429
    %949 = vmatprep.subr.mxu0 %v424
    %950 = vmatpush2.msra.mxu0 %v423
    %951 = vmatprep.subr.mxu0 %v418
    %952 = vmatpush2.msra.mxu0 %v417
    %953 = vmatprep.subr.mxu0 %v412
    %954 = vmatpush2.msra.mxu0 %v411
    %955 = vmatprep.subr.mxu0 %v406
    %956 = vmatpush2.msra.mxu0 %v405
    %957 = vmatprep.subr.mxu0 %v400
    %958 = vmatpush2.msra.mxu0 %v399
    %959 = vmatprep.subr.mxu0 %v394
    %960 = vmatpush2.msra.mxu0 %v393
    %961 = vmatprep.subr.mxu0 %v388
    %962 = vmatpush2.msra.mxu0 %v387
    %963 = vmatprep.subr.mxu0 %v382
    %964 = vmatpush2.msra.mxu0 %v381
    %965 = vmatprep.subr.mxu0 %v376
    %966 = vmatpush2.msra.mxu0 %v375
    %967 = vmatprep.subr.mxu0 %v370
    %968 = vmatpush2.msra.mxu0 %v369
    %969 = vmatprep.subr.mxu0 %v364
    %970 = vmatpush2.msra.mxu0 %v363
    %971 = vmatprep.subr.mxu0 %v358
    %972 = vmatpush2.msra.mxu0 %v357
    %973 = vmatprep.subr.mxu0 %v352
    %974 = vmatpush2.msra.mxu0 %v351
    %975 = vmatprep.subr.mxu0 %v346
    %976 = vmatpush2.msra.mxu0 %v345
    %977 = vmatprep.mubr.f32.mxu0 %v242
    %978 = vmatmul.mubr.f32.gmra.mxu0 %v241
    %v979 = vpop.f32.mrf.mxu0
    %v980 = vadd.f32 0.0, %v979
    %v981 = vpop.f32.mrf.mxu0
    %v982 = vadd.f32 0.0, %v981
    %983 = vdwg.mxu0
    %984 = vmatprep.subr.mxu0 %v532
    %985 = vmatpush1.msra.mxu0 %v531
    %986 = vmatprep.subr.mxu0 %v526
    %987 = vmatpush1.msra.mxu0 %v525
    %988 = vmatprep.subr.mxu0 %v520
    %989 = vmatpush1.msra.mxu0 %v519
    %990 = vmatprep.subr.mxu0 %v514
    %991 = vmatpush1.msra.mxu0 %v513
    %992 = vmatprep.subr.mxu0 %v508
    %993 = vmatpush1.msra.mxu0 %v507
    %994 = vmatprep.subr.mxu0 %v502
    %995 = vmatpush1.msra.mxu0 %v501
    %996 = vmatprep.subr.mxu0 %v496
    %997 = vmatpush1.msra.mxu0 %v495
    %998 = vmatprep.subr.mxu0 %v490
    %999 = vmatpush1.msra.mxu0 %v489
    %1000 = vmatprep.subr.mxu0 %v484
    %1001 = vmatpush1.msra.mxu0 %v483
    %1002 = vmatprep.subr.mxu0 %v478
    %1003 = vmatpush1.msra.mxu0 %v477
    %1004 = vmatprep.subr.mxu0 %v472
    %1005 = vmatpush1.msra.mxu0 %v471
    %1006 = vmatprep.subr.mxu0 %v466
    %1007 = vmatpush1.msra.mxu0 %v465
    %1008 = vmatprep.subr.mxu0 %v460
    %1009 = vmatpush1.msra.mxu0 %v459
    %1010 = vmatprep.subr.mxu0 %v454
    %1011 = vmatpush1.msra.mxu0 %v453
    %1012 = vmatprep.subr.mxu0 %v448
    %1013 = vmatpush1.msra.mxu0 %v447
    %1014 = vmatprep.subr.mxu0 %v442
    %1015 = vmatpush1.msra.mxu0 %v441
    %1016 = vmatprep.subr.mxu0 %v628
    %1017 = vmatpush2.msra.mxu0 %v627
    %1018 = vmatprep.subr.mxu0 %v622
    %1019 = vmatpush2.msra.mxu0 %v621
    %1020 = vmatprep.subr.mxu0 %v616
    %1021 = vmatpush2.msra.mxu0 %v615
    %1022 = vmatprep.subr.mxu0 %v610
    %1023 = vmatpush2.msra.mxu0 %v609
    %1024 = vmatprep.subr.mxu0 %v604
    %1025 = vmatpush2.msra.mxu0 %v603
    %1026 = vmatprep.subr.mxu0 %v598
    %1027 = vmatpush2.msra.mxu0 %v597
    %1028 = vmatprep.subr.mxu0 %v592
    %1029 = vmatpush2.msra.mxu0 %v591
    %1030 = vmatprep.subr.mxu0 %v586
    %1031 = vmatpush2.msra.mxu0 %v585
    %1032 = vmatprep.subr.mxu0 %v580
    %1033 = vmatpush2.msra.mxu0 %v579
    %1034 = vmatprep.subr.mxu0 %v574
    %1035 = vmatpush2.msra.mxu0 %v573
    %1036 = vmatprep.subr.mxu0 %v568
    %1037 = vmatpush2.msra.mxu0 %v567
    %1038 = vmatprep.subr.mxu0 %v562
    %1039 = vmatpush2.msra.mxu0 %v561
    %1040 = vmatprep.subr.mxu0 %v556
    %1041 = vmatpush2.msra.mxu0 %v555
    %1042 = vmatprep.subr.mxu0 %v550
    %1043 = vmatpush2.msra.mxu0 %v549
    %1044 = vmatprep.subr.mxu0 %v544
    %1045 = vmatpush2.msra.mxu0 %v543
    %1046 = vmatprep.subr.mxu0 %v538
    %1047 = vmatpush2.msra.mxu0 %v537
    %1048 = vmatprep.mubr.f32.mxu0 %v244
    %1049 = vmatmul.mubr.f32.gmra.mxu0 %v243
    %v1050 = vpop.f32.mrf.mxu0
    %v1051 = vadd.f32 %v980, %v1050
    %v1052 = vpop.f32.mrf.mxu0
    %v1053 = vadd.f32 %v982, %v1052
    %1054 = vdwg.mxu0
    %vm1055 = vcmp.gt.f32.partialorder %v767, 0.0
    %vm1056 = vcmp.gt.f32.partialorder %v769, 0.0
    %vm1057 = vcmp.gt.f32.partialorder %v909, 0.0
    %vm1058 = vcmp.gt.f32.partialorder %v911, 0.0
    %vm1059 = vcmp.gt.f32.partialorder %v1051, 0.0
    %vm1060 = vcmp.gt.f32.partialorder %v1053, 0.0
    %v1061 = vmul.f32 %v767, 0.2
    %v1062 = vmul.f32 %v769, 0.2
    %v1063 = vmul.f32 %v909, 0.2
    %v1064 = vmul.f32 %v911, 0.2
    %v1065 = vmul.f32 %v1051, 0.2
    %v1066 = vmul.f32 %v1053, 0.2
    %v1067 = vsel %vm1055, %v767, %v1061
    %v1068 = vsel %vm1056, %v769, %v1062
    %v1069 = vsel %vm1057, %v909, %v1063
    %v1070 = vsel %vm1058, %v911, %v1064
    %v1071 = vsel %vm1059, %v1051, %v1065
    %v1072 = vsel %vm1060, %v1053, %v1066
    %v1073 = vld [vmem:[#allocation10] sm:$0x3f]
    %v1074 = vld [vmem:[#allocation11] sm:$0x3f]
    %v1075 = vrot.slane %v1067, 4
    %v1076 = vadd.f32 %v1067, %v1075
    %v1077 = vrot.slane %v1076, 2
    %v1078 = vadd.f32 %v1076, %v1077
    %v1079 = vrot.slane %v1078, 1
    %v1080 = vadd.f32 %v1078, %v1079
    %v1081 = vrot.slane %v1068, 4
    %v1082 = vadd.f32 %v1068, %v1081
    %v1083 = vrot.slane %v1082, 2
    %v1084 = vadd.f32 %v1082, %v1083
    %v1085 = vrot.slane %v1084, 1
    %v1086 = vadd.f32 %v1084, %v1085
    %v1087 = vrot.slane %v1069, 4
    %v1088 = vadd.f32 %v1069, %v1087
    %v1089 = vrot.slane %v1088, 2
    %v1090 = vadd.f32 %v1088, %v1089
    %v1091 = vrot.slane %v1090, 1
    %v1092 = vadd.f32 %v1090, %v1091
    %v1093 = vrot.slane %v1070, 4
    %v1094 = vadd.f32 %v1070, %v1093
    %v1095 = vrot.slane %v1094, 2
    %v1096 = vadd.f32 %v1094, %v1095
    %v1097 = vrot.slane %v1096, 1
    %v1098 = vadd.f32 %v1096, %v1097
    %v1099 = vrot.slane %v1071, 4
    %v1100 = vadd.f32 %v1071, %v1099
    %v1101 = vrot.slane %v1100, 2
    %v1102 = vadd.f32 %v1100, %v1101
    %v1103 = vrot.slane %v1102, 1
    %v1104 = vadd.f32 %v1102, %v1103
    %v1105 = vrot.slane %v1072, 4
    %v1106 = vadd.f32 %v1072, %v1105
    %v1107 = vrot.slane %v1106, 2
    %v1108 = vadd.f32 %v1106, %v1107
    %v1109 = vrot.slane %v1108, 1
    %v1110 = vadd.f32 %v1108, %v1109
    %v1111 = vmul.f32 %v1080, %v142
    %v1112 = vmul.f32 %v1086, %v142
    %v1113 = vmul.f32 %v1092, %v142
    %v1114 = vmul.f32 %v1098, %v142
    %v1115 = vmul.f32 %v1104, %v142
    %v1116 = vmul.f32 %v1110, %v142
    %v1117 = vsub.f32 %v1067, %v1111
    %v1118 = vsub.f32 %v1068, %v1112
    %v1119 = vsub.f32 %v1069, %v1113
    %v1120 = vsub.f32 %v1070, %v1114
    %v1121 = vsub.f32 %v1071, %v1115
    %v1122 = vsub.f32 %v1072, %v1116
    %v1123 = vmul.f32 %v1117, %v1117
    %v1124 = vmul.f32 %v1118, %v1118
    %v1125 = vmul.f32 %v1119, %v1119
    %v1126 = vmul.f32 %v1120, %v1120
    %v1127 = vmul.f32 %v1121, %v1121
    %v1128 = vmul.f32 %v1122, %v1122
    %v1129 = vrot.slane %v1123, 4
    %v1130 = vadd.f32 %v1123, %v1129
    %v1131 = vrot.slane %v1130, 2
    %v1132 = vadd.f32 %v1130, %v1131
    %v1133 = vrot.slane %v1132, 1
    %v1134 = vadd.f32 %v1132, %v1133
    %v1135 = vrot.slane %v1124, 4
    %v1136 = vadd.f32 %v1124, %v1135
    %v1137 = vrot.slane %v1136, 2
    %v1138 = vadd.f32 %v1136, %v1137
    %v1139 = vrot.slane %v1138, 1
    %v1140 = vadd.f32 %v1138, %v1139
    %v1141 = vrot.slane %v1125, 4
    %v1142 = vadd.f32 %v1125, %v1141
    %v1143 = vrot.slane %v1142, 2
    %v1144 = vadd.f32 %v1142, %v1143
    %v1145 = vrot.slane %v1144, 1
    %v1146 = vadd.f32 %v1144, %v1145
    %v1147 = vrot.slane %v1126, 4
    %v1148 = vadd.f32 %v1126, %v1147
    %v1149 = vrot.slane %v1148, 2
    %v1150 = vadd.f32 %v1148, %v1149
    %v1151 = vrot.slane %v1150, 1
    %v1152 = vadd.f32 %v1150, %v1151
    %v1153 = vrot.slane %v1127, 4
    %v1154 = vadd.f32 %v1127, %v1153
    %v1155 = vrot.slane %v1154, 2
    %v1156 = vadd.f32 %v1154, %v1155
    %v1157 = vrot.slane %v1156, 1
    %v1158 = vadd.f32 %v1156, %v1157
    %v1159 = vrot.slane %v1128, 4
    %v1160 = vadd.f32 %v1128, %v1159
    %v1161 = vrot.slane %v1160, 2
    %v1162 = vadd.f32 %v1160, %v1161
    %v1163 = vrot.slane %v1162, 1
    %v1164 = vadd.f32 %v1162, %v1163
    %v1165 = vmul.f32 %v1134, %v142
    %v1166 = vmul.f32 %v1140, %v142
    %v1167 = vmul.f32 %v1146, %v142
    %v1168 = vmul.f32 %v1152, %v142
    %v1169 = vmul.f32 %v1158, %v142
    %v1170 = vmul.f32 %v1164, %v142
    %v1171 = vadd.f32 %v1165, 0.8
    %v1172 = vadd.f32 %v1166, 0.8
    %v1173 = vadd.f32 %v1167, 0.8
    %v1174 = vadd.f32 %v1168, 0.8
    %v1175 = vadd.f32 %v1169, 0.8
    %v1176 = vadd.f32 %v1170, 0.8
    %v1177 = vrsqrt.pop %v1171
    %v1178 = vrsqrt.pop %v1172
    %v1179 = vrsqrt.pop %v1173
    %v1180 = vrsqrt.pop %v1174
    %v1181 = vrsqrt.pop %v1175
    %v1182 = vrsqrt.pop %v1176
    %v1183 = vmul.f32 %v1117, %v1177
    %v1184 = vmul.f32 %v1118, %v1178
    %v1185 = vmul.f32 %v1119, %v1179
    %v1186 = vmul.f32 %v1120, %v1180
    %v1187 = vmul.f32 %v1121, %v1181
    %v1188 = vmul.f32 %v1122, %v1182
    %v1190 = vlaneseq
    %v1191 = vshrl.u32 %v1190, 7
    %v1192 = vsub.s32 0, %v1191
    %v1193 = vrot.slane %v1073, %v1192
    %v1194 = vlaneseq
    %v1195 = vshrl.u32 %v1194, 7
    %v1196 = vsub.s32 1, %v1195
    %v1197 = vrot.slane %v1073, %v1196
    %v1198 = vlaneseq
    %v1199 = vshrl.u32 %v1198, 7
    %v1200 = vsub.s32 2, %v1199
    %v1201 = vrot.slane %v1073, %v1200
    %v1202 = vlaneseq
    %v1203 = vshrl.u32 %v1202, 7
    %v1204 = vsub.s32 3, %v1203
    %v1205 = vrot.slane %v1073, %v1204
    %v1206 = vlaneseq
    %v1207 = vshrl.u32 %v1206, 7
    %v1208 = vsub.s32 4, %v1207
    %v1209 = vrot.slane %v1073, %v1208
    %v1210 = vlaneseq
    %v1211 = vshrl.u32 %v1210, 7
    %v1212 = vsub.s32 5, %v1211
    %v1213 = vrot.slane %v1073, %v1212
    %v1220 = vmul.f32 %v1183, %v1193
    %v1221 = vmul.f32 %v1184, %v1197
    %v1222 = vmul.f32 %v1185, %v1201
    %v1223 = vmul.f32 %v1186, %v1205
    %v1224 = vmul.f32 %v1187, %v1209
    %v1225 = vmul.f32 %v1188, %v1213
    %v1227 = vlaneseq
    %v1228 = vshrl.u32 %v1227, 7
    %v1229 = vsub.s32 0, %v1228
    %v1230 = vrot.slane %v1074, %v1229
    %v1231 = vlaneseq
    %v1232 = vshrl.u32 %v1231, 7
    %v1233 = vsub.s32 1, %v1232
    %v1234 = vrot.slane %v1074, %v1233
    %v1235 = vlaneseq
    %v1236 = vshrl.u32 %v1235, 7
    %v1237 = vsub.s32 2, %v1236
    %v1238 = vrot.slane %v1074, %v1237
    %v1239 = vlaneseq
    %v1240 = vshrl.u32 %v1239, 7
    %v1241 = vsub.s32 3, %v1240
    %v1242 = vrot.slane %v1074, %v1241
    %v1243 = vlaneseq
    %v1244 = vshrl.u32 %v1243, 7
    %v1245 = vsub.s32 4, %v1244
    %v1246 = vrot.slane %v1074, %v1245
    %v1247 = vlaneseq
    %v1248 = vshrl.u32 %v1247, 7
    %v1249 = vsub.s32 5, %v1248
    %v1250 = vrot.slane %v1074, %v1249
    %v1257 = vadd.f32 %v1220, %v1230
    %v1258 = vadd.f32 %v1221, %v1234
    %v1259 = vadd.f32 %v1222, %v1238
    %v1260 = vadd.f32 %v1223, %v1242
    %v1261 = vadd.f32 %v1224, %v1246
    %v1262 = vadd.f32 %v1225, %v1250
    %v1263 = vld [vmem:[#allocation13] sm:$0xff]
    %v1264 = vld [vmem:[#allocation13 + $0x8] sm:$0xff]
    %v1265 = vld [vmem:[#allocation13 + $0x10] sm:$0xff]
    %v1266 = vld [vmem:[#allocation13 + $0x18] sm:$0xff]
    %v1267 = vld [vmem:[#allocation13 + $0x20] sm:$0xff]
    %v1268 = vld [vmem:[#allocation13 + $0x28] sm:$0xff]
    %v1269 = vld [vmem:[#allocation13 + $0x30] sm:$0xff]
    %v1270 = vld [vmem:[#allocation13 + $0x38] sm:$0xff]
    %v1271 = vld [vmem:[#allocation13 + $0x40] sm:$0xff]
    %v1272 = vld [vmem:[#allocation13 + $0x48] sm:$0xff]
    %v1273 = vld [vmem:[#allocation13 + $0x50] sm:$0xff]
    %v1274 = vld [vmem:[#allocation13 + $0x58] sm:$0xff]
    %v1275 = vld [vmem:[#allocation13 + $0x60] sm:$0xff]
    %v1276 = vld [vmem:[#allocation13 + $0x68] sm:$0xff]
    %v1277 = vld [vmem:[#allocation13 + $0x70] sm:$0xff]
    %v1278 = vld [vmem:[#allocation13 + $0x78] sm:$0xff]
    %v1279 = vld [vmem:[#allocation13 + $0x80] sm:$0xff]
    %v1280 = vld [vmem:[#allocation13 + $0x88] sm:$0xff]
    %v1281 = vld [vmem:[#allocation13 + $0x90] sm:$0xff]
    %v1282 = vld [vmem:[#allocation13 + $0x98] sm:$0xff]
    %v1283 = vld [vmem:[#allocation13 + $0xa0] sm:$0xff]
    %v1284 = vld [vmem:[#allocation13 + $0xa8] sm:$0xff]
    %v1285 = vld [vmem:[#allocation13 + $0xb0] sm:$0xff]
    %v1286 = vld [vmem:[#allocation13 + $0xb8] sm:$0xff]
    %v1287 = vld [vmem:[#allocation13 + $0xc0] sm:$0xff]
    %v1288 = vld [vmem:[#allocation13 + $0xc8] sm:$0xff]
    %v1289 = vld [vmem:[#allocation13 + $0xd0] sm:$0xff]
    %v1290 = vld [vmem:[#allocation13 + $0xd8] sm:$0xff]
    %v1291 = vld [vmem:[#allocation13 + $0xe0] sm:$0xff]
    %v1292 = vld [vmem:[#allocation13 + $0xe8] sm:$0xff]
    %v1293 = vld [vmem:[#allocation13 + $0xf0] sm:$0xff]
    %v1294 = vld [vmem:[#allocation13 + $0xf8] sm:$0xff]
    %v1295 = vld [vmem:[#allocation13 + $0x100] sm:$0xff]
    %v1296 = vld [vmem:[#allocation13 + $0x108] sm:$0xff]
    %v1297 = vld [vmem:[#allocation13 + $0x110] sm:$0xff]
    %v1298 = vld [vmem:[#allocation13 + $0x118] sm:$0xff]
    %v1299 = vld [vmem:[#allocation13 + $0x120] sm:$0xff]
    %v1300 = vld [vmem:[#allocation13 + $0x128] sm:$0xff]
    %v1301 = vld [vmem:[#allocation13 + $0x130] sm:$0xff]
    %v1302 = vld [vmem:[#allocation13 + $0x138] sm:$0xff]
    %v1303 = vld [vmem:[#allocation13 + $0x140] sm:$0xff]
    %v1304 = vld [vmem:[#allocation13 + $0x148] sm:$0xff]
    %v1305 = vld [vmem:[#allocation13 + $0x150] sm:$0xff]
    %v1306 = vld [vmem:[#allocation13 + $0x158] sm:$0xff]
    %v1307 = vld [vmem:[#allocation13 + $0x160] sm:$0xff]
    %v1308 = vld [vmem:[#allocation13 + $0x168] sm:$0xff]
    %v1309 = vld [vmem:[#allocation13 + $0x170] sm:$0xff]
    %v1310 = vld [vmem:[#allocation13 + $0x178] sm:$0xff]
    %v1311 = vld [vmem:[#allocation13 + $0x180] sm:$0xff]
    %v1312 = vld [vmem:[#allocation13 + $0x188] sm:$0xff]
    %v1313 = vld [vmem:[#allocation13 + $0x190] sm:$0xff]
    %v1314 = vld [vmem:[#allocation13 + $0x198] sm:$0xff]
    %v1315 = vld [vmem:[#allocation13 + $0x1a0] sm:$0xff]
    %v1316 = vld [vmem:[#allocation13 + $0x1a8] sm:$0xff]
    %v1317 = vld [vmem:[#allocation13 + $0x1b0] sm:$0xff]
    %v1318 = vld [vmem:[#allocation13 + $0x1b8] sm:$0xff]
    %v1319 = vld [vmem:[#allocation13 + $0x1c0] sm:$0xff]
    %v1320 = vld [vmem:[#allocation13 + $0x1c8] sm:$0xff]
    %v1321 = vld [vmem:[#allocation13 + $0x1d0] sm:$0xff]
    %v1322 = vld [vmem:[#allocation13 + $0x1d8] sm:$0xff]
    %v1323 = vld [vmem:[#allocation13 + $0x1e0] sm:$0xff]
    %v1324 = vld [vmem:[#allocation13 + $0x1e8] sm:$0xff]
    %v1325 = vld [vmem:[#allocation13 + $0x1f0] sm:$0xff]
    %v1326 = vld [vmem:[#allocation13 + $0x1f8] sm:$0xff]
    %v1327 = vld [vmem:[#allocation13 + $0x200] sm:$0xff]
    %v1328 = vld [vmem:[#allocation13 + $0x208] sm:$0xff]
    %v1329 = vld [vmem:[#allocation13 + $0x210] sm:$0xff]
    %v1330 = vld [vmem:[#allocation13 + $0x218] sm:$0xff]
    %v1331 = vld [vmem:[#allocation13 + $0x220] sm:$0xff]
    %v1332 = vld [vmem:[#allocation13 + $0x228] sm:$0xff]
    %v1333 = vld [vmem:[#allocation13 + $0x230] sm:$0xff]
    %v1334 = vld [vmem:[#allocation13 + $0x238] sm:$0xff]
    %v1335 = vld [vmem:[#allocation13 + $0x240] sm:$0xff]
    %v1336 = vld [vmem:[#allocation13 + $0x248] sm:$0xff]
    %v1337 = vld [vmem:[#allocation13 + $0x250] sm:$0xff]
    %v1338 = vld [vmem:[#allocation13 + $0x258] sm:$0xff]
    %v1339 = vld [vmem:[#allocation13 + $0x260] sm:$0xff]
    %v1340 = vld [vmem:[#allocation13 + $0x268] sm:$0xff]
    %v1341 = vld [vmem:[#allocation13 + $0x270] sm:$0xff]
    %v1342 = vld [vmem:[#allocation13 + $0x278] sm:$0xff]
    %v1343 = vld [vmem:[#allocation13 + $0x280] sm:$0xff]
    %v1344 = vld [vmem:[#allocation13 + $0x288] sm:$0xff]
    %v1345 = vld [vmem:[#allocation13 + $0x290] sm:$0xff]
    %v1346 = vld [vmem:[#allocation13 + $0x298] sm:$0xff]
    %v1347 = vld [vmem:[#allocation13 + $0x2a0] sm:$0xff]
    %v1348 = vld [vmem:[#allocation13 + $0x2a8] sm:$0xff]
    %v1349 = vld [vmem:[#allocation13 + $0x2b0] sm:$0xff]
    %v1350 = vld [vmem:[#allocation13 + $0x2b8] sm:$0xff]
    %v1351 = vld [vmem:[#allocation13 + $0x2c0] sm:$0xff]
    %v1352 = vld [vmem:[#allocation13 + $0x2c8] sm:$0xff]
    %v1353 = vld [vmem:[#allocation13 + $0x2d0] sm:$0xff]
    %v1354 = vld [vmem:[#allocation13 + $0x2d8] sm:$0xff]
    %v1355 = vld [vmem:[#allocation13 + $0x2e0] sm:$0xff]
    %v1356 = vld [vmem:[#allocation13 + $0x2e8] sm:$0xff]
    %v1357 = vld [vmem:[#allocation13 + $0x2f0] sm:$0xff]
    %v1358 = vld [vmem:[#allocation13 + $0x2f8] sm:$0xff]
    %v1359 = vld [vmem:[#allocation13 + $0x300] sm:$0xff]
    %v1360 = vld [vmem:[#allocation13 + $0x308] sm:$0xff]
    %v1361 = vld [vmem:[#allocation13 + $0x310] sm:$0xff]
    %v1362 = vld [vmem:[#allocation13 + $0x318] sm:$0xff]
    %v1363 = vld [vmem:[#allocation13 + $0x320] sm:$0xff]
    %v1364 = vld [vmem:[#allocation13 + $0x328] sm:$0xff]
    %v1365 = vld [vmem:[#allocation13 + $0x330] sm:$0xff]
    %v1366 = vld [vmem:[#allocation13 + $0x338] sm:$0xff]
    %v1367 = vld [vmem:[#allocation13 + $0x340] sm:$0xff]
    %v1368 = vld [vmem:[#allocation13 + $0x348] sm:$0xff]
    %v1369 = vld [vmem:[#allocation13 + $0x350] sm:$0xff]
    %v1370 = vld [vmem:[#allocation13 + $0x358] sm:$0xff]
    %v1371 = vld [vmem:[#allocation13 + $0x360] sm:$0xff]
    %v1372 = vld [vmem:[#allocation13 + $0x368] sm:$0xff]
    %v1373 = vld [vmem:[#allocation13 + $0x370] sm:$0xff]
    %v1374 = vld [vmem:[#allocation13 + $0x378] sm:$0xff]
    %v1375 = vld [vmem:[#allocation13 + $0x380] sm:$0xff]
    %v1376 = vld [vmem:[#allocation13 + $0x388] sm:$0xff]
    %v1377 = vld [vmem:[#allocation13 + $0x390] sm:$0xff]
    %v1378 = vld [vmem:[#allocation13 + $0x398] sm:$0xff]
    %v1379 = vld [vmem:[#allocation13 + $0x3a0] sm:$0xff]
    %v1380 = vld [vmem:[#allocation13 + $0x3a8] sm:$0xff]
    %v1381 = vld [vmem:[#allocation13 + $0x3b0] sm:$0xff]
    %v1382 = vld [vmem:[#allocation13 + $0x3b8] sm:$0xff]
    %v1383 = vld [vmem:[#allocation13 + $0x3c0] sm:$0xff]
    %v1384 = vld [vmem:[#allocation13 + $0x3c8] sm:$0xff]
    %v1385 = vld [vmem:[#allocation13 + $0x3d0] sm:$0xff]
    %v1386 = vld [vmem:[#allocation13 + $0x3d8] sm:$0xff]
    %v1387 = vld [vmem:[#allocation13 + $0x3e0] sm:$0xff]
    %v1388 = vld [vmem:[#allocation13 + $0x3e8] sm:$0xff]
    %v1389 = vld [vmem:[#allocation13 + $0x3f0] sm:$0xff]
    %v1390 = vld [vmem:[#allocation13 + $0x3f8] sm:$0xff]
    %v1391 = vld [vmem:[#allocation13 + $0x400] sm:$0xff]
    %v1392 = vld [vmem:[#allocation13 + $0x408] sm:$0xff]
    %v1393 = vld [vmem:[#allocation13 + $0x410] sm:$0xff]
    %v1394 = vld [vmem:[#allocation13 + $0x418] sm:$0xff]
    %v1395 = vld [vmem:[#allocation13 + $0x420] sm:$0xff]
    %v1396 = vld [vmem:[#allocation13 + $0x428] sm:$0xff]
    %v1397 = vld [vmem:[#allocation13 + $0x430] sm:$0xff]
    %v1398 = vld [vmem:[#allocation13 + $0x438] sm:$0xff]
    %v1399 = vld [vmem:[#allocation13 + $0x440] sm:$0xff]
    %v1400 = vld [vmem:[#allocation13 + $0x448] sm:$0xff]
    %v1401 = vld [vmem:[#allocation13 + $0x450] sm:$0xff]
    %v1402 = vld [vmem:[#allocation13 + $0x458] sm:$0xff]
    %v1403 = vld [vmem:[#allocation13 + $0x460] sm:$0xff]
    %v1404 = vld [vmem:[#allocation13 + $0x468] sm:$0xff]
    %v1405 = vld [vmem:[#allocation13 + $0x470] sm:$0xff]
    %v1406 = vld [vmem:[#allocation13 + $0x478] sm:$0xff]
    %v1407 = vld [vmem:[#allocation13 + $0x480] sm:$0xff]
    %v1408 = vld [vmem:[#allocation13 + $0x488] sm:$0xff]
    %v1409 = vld [vmem:[#allocation13 + $0x490] sm:$0xff]
    %v1410 = vld [vmem:[#allocation13 + $0x498] sm:$0xff]
    %v1411 = vld [vmem:[#allocation13 + $0x4a0] sm:$0xff]
    %v1412 = vld [vmem:[#allocation13 + $0x4a8] sm:$0xff]
    %v1413 = vld [vmem:[#allocation13 + $0x4b0] sm:$0xff]
    %v1414 = vld [vmem:[#allocation13 + $0x4b8] sm:$0xff]
    %v1415 = vld [vmem:[#allocation13 + $0x4c0] sm:$0xff]
    %v1416 = vld [vmem:[#allocation13 + $0x4c8] sm:$0xff]
    %v1417 = vld [vmem:[#allocation13 + $0x4d0] sm:$0xff]
    %v1418 = vld [vmem:[#allocation13 + $0x4d8] sm:$0xff]
    %v1419 = vld [vmem:[#allocation13 + $0x4e0] sm:$0xff]
    %v1420 = vld [vmem:[#allocation13 + $0x4e8] sm:$0xff]
    %v1421 = vld [vmem:[#allocation13 + $0x4f0] sm:$0xff]
    %v1422 = vld [vmem:[#allocation13 + $0x4f8] sm:$0xff]
    %v1423 = vld [vmem:[#allocation13 + $0x500] sm:$0xff]
    %v1424 = vld [vmem:[#allocation13 + $0x508] sm:$0xff]
    %v1425 = vld [vmem:[#allocation13 + $0x510] sm:$0xff]
    %v1426 = vld [vmem:[#allocation13 + $0x518] sm:$0xff]
    %v1427 = vld [vmem:[#allocation13 + $0x520] sm:$0xff]
    %v1428 = vld [vmem:[#allocation13 + $0x528] sm:$0xff]
    %v1429 = vld [vmem:[#allocation13 + $0x530] sm:$0xff]
    %v1430 = vld [vmem:[#allocation13 + $0x538] sm:$0xff]
    %v1431 = vld [vmem:[#allocation13 + $0x540] sm:$0xff]
    %v1432 = vld [vmem:[#allocation13 + $0x548] sm:$0xff]
    %v1433 = vld [vmem:[#allocation13 + $0x550] sm:$0xff]
    %v1434 = vld [vmem:[#allocation13 + $0x558] sm:$0xff]
    %v1435 = vld [vmem:[#allocation13 + $0x560] sm:$0xff]
    %v1436 = vld [vmem:[#allocation13 + $0x568] sm:$0xff]
    %v1437 = vld [vmem:[#allocation13 + $0x570] sm:$0xff]
    %v1438 = vld [vmem:[#allocation13 + $0x578] sm:$0xff]
    %v1439 = vld [vmem:[#allocation13 + $0x580] sm:$0xff]
    %v1440 = vld [vmem:[#allocation13 + $0x588] sm:$0xff]
    %v1441 = vld [vmem:[#allocation13 + $0x590] sm:$0xff]
    %v1442 = vld [vmem:[#allocation13 + $0x598] sm:$0xff]
    %v1443 = vld [vmem:[#allocation13 + $0x5a0] sm:$0xff]
    %v1444 = vld [vmem:[#allocation13 + $0x5a8] sm:$0xff]
    %v1445 = vld [vmem:[#allocation13 + $0x5b0] sm:$0xff]
    %v1446 = vld [vmem:[#allocation13 + $0x5b8] sm:$0xff]
    %v1447 = vld [vmem:[#allocation13 + $0x5c0] sm:$0xff]
    %v1448 = vld [vmem:[#allocation13 + $0x5c8] sm:$0xff]
    %v1449 = vld [vmem:[#allocation13 + $0x5d0] sm:$0xff]
    %v1450 = vld [vmem:[#allocation13 + $0x5d8] sm:$0xff]
    %v1451 = vld [vmem:[#allocation13 + $0x5e0] sm:$0xff]
    %v1452 = vld [vmem:[#allocation13 + $0x5e8] sm:$0xff]
    %v1453 = vld [vmem:[#allocation13 + $0x5f0] sm:$0xff]
    %v1454 = vld [vmem:[#allocation13 + $0x5f8] sm:$0xff]
    %v1455 = vld [vmem:[#allocation13 + $0x600] sm:$0xff]
    %v1456 = vld [vmem:[#allocation13 + $0x608] sm:$0xff]
    %v1457 = vld [vmem:[#allocation13 + $0x610] sm:$0xff]
    %v1458 = vld [vmem:[#allocation13 + $0x618] sm:$0xff]
    %v1459 = vld [vmem:[#allocation13 + $0x620] sm:$0xff]
    %v1460 = vld [vmem:[#allocation13 + $0x628] sm:$0xff]
    %v1461 = vld [vmem:[#allocation13 + $0x630] sm:$0xff]
    %v1462 = vld [vmem:[#allocation13 + $0x638] sm:$0xff]
    %v1463 = vld [vmem:[#allocation13 + $0x640] sm:$0xff]
    %v1464 = vld [vmem:[#allocation13 + $0x648] sm:$0xff]
    %v1465 = vld [vmem:[#allocation13 + $0x650] sm:$0xff]
    %v1466 = vld [vmem:[#allocation13 + $0x658] sm:$0xff]
    %v1467 = vld [vmem:[#allocation13 + $0x660] sm:$0xff]
    %v1468 = vld [vmem:[#allocation13 + $0x668] sm:$0xff]
    %v1469 = vld [vmem:[#allocation13 + $0x670] sm:$0xff]
    %v1470 = vld [vmem:[#allocation13 + $0x678] sm:$0xff]
    %v1471 = vld [vmem:[#allocation13 + $0x680] sm:$0xff]
    %v1472 = vld [vmem:[#allocation13 + $0x688] sm:$0xff]
    %v1473 = vld [vmem:[#allocation13 + $0x690] sm:$0xff]
    %v1474 = vld [vmem:[#allocation13 + $0x698] sm:$0xff]
    %v1475 = vld [vmem:[#allocation13 + $0x6a0] sm:$0xff]
    %v1476 = vld [vmem:[#allocation13 + $0x6a8] sm:$0xff]
    %v1477 = vld [vmem:[#allocation13 + $0x6b0] sm:$0xff]
    %v1478 = vld [vmem:[#allocation13 + $0x6b8] sm:$0xff]
    %v1479 = vld [vmem:[#allocation13 + $0x6c0] sm:$0xff]
    %v1480 = vld [vmem:[#allocation13 + $0x6c8] sm:$0xff]
    %v1481 = vld [vmem:[#allocation13 + $0x6d0] sm:$0xff]
    %v1482 = vld [vmem:[#allocation13 + $0x6d8] sm:$0xff]
    %v1483 = vld [vmem:[#allocation13 + $0x6e0] sm:$0xff]
    %v1484 = vld [vmem:[#allocation13 + $0x6e8] sm:$0xff]
    %v1485 = vld [vmem:[#allocation13 + $0x6f0] sm:$0xff]
    %v1486 = vld [vmem:[#allocation13 + $0x6f8] sm:$0xff]
    %v1487 = vld [vmem:[#allocation13 + $0x700] sm:$0xff]
    %v1488 = vld [vmem:[#allocation13 + $0x708] sm:$0xff]
    %v1489 = vld [vmem:[#allocation13 + $0x710] sm:$0xff]
    %v1490 = vld [vmem:[#allocation13 + $0x718] sm:$0xff]
    %v1491 = vld [vmem:[#allocation13 + $0x720] sm:$0xff]
    %v1492 = vld [vmem:[#allocation13 + $0x728] sm:$0xff]
    %v1493 = vld [vmem:[#allocation13 + $0x730] sm:$0xff]
    %v1494 = vld [vmem:[#allocation13 + $0x738] sm:$0xff]
    %v1495 = vld [vmem:[#allocation13 + $0x740] sm:$0xff]
    %v1496 = vld [vmem:[#allocation13 + $0x748] sm:$0xff]
    %v1497 = vld [vmem:[#allocation13 + $0x750] sm:$0xff]
    %v1498 = vld [vmem:[#allocation13 + $0x758] sm:$0xff]
    %v1499 = vld [vmem:[#allocation13 + $0x760] sm:$0xff]
    %v1500 = vld [vmem:[#allocation13 + $0x768] sm:$0xff]
    %v1501 = vld [vmem:[#allocation13 + $0x770] sm:$0xff]
    %v1502 = vld [vmem:[#allocation13 + $0x778] sm:$0xff]
    %v1503 = vld [vmem:[#allocation13 + $0x780] sm:$0xff]
    %v1504 = vld [vmem:[#allocation13 + $0x788] sm:$0xff]
    %v1505 = vld [vmem:[#allocation13 + $0x790] sm:$0xff]
    %v1506 = vld [vmem:[#allocation13 + $0x798] sm:$0xff]
    %v1507 = vld [vmem:[#allocation13 + $0x7a0] sm:$0xff]
    %v1508 = vld [vmem:[#allocation13 + $0x7a8] sm:$0xff]
    %v1509 = vld [vmem:[#allocation13 + $0x7b0] sm:$0xff]
    %v1510 = vld [vmem:[#allocation13 + $0x7b8] sm:$0xff]
    %v1511 = vld [vmem:[#allocation13 + $0x7c0] sm:$0xff]
    %v1512 = vld [vmem:[#allocation13 + $0x7c8] sm:$0xff]
    %v1513 = vld [vmem:[#allocation13 + $0x7d0] sm:$0xff]
    %v1514 = vld [vmem:[#allocation13 + $0x7d8] sm:$0xff]
    %v1515 = vld [vmem:[#allocation13 + $0x7e0] sm:$0xff]
    %v1516 = vld [vmem:[#allocation13 + $0x7e8] sm:$0xff]
    %v1517 = vld [vmem:[#allocation13 + $0x7f0] sm:$0xff]
    %v1518 = vld [vmem:[#allocation13 + $0x7f8] sm:$0xff]
    %v1519 = vld [vmem:[#allocation13 + $0x800] sm:$0xff]
    %v1520 = vld [vmem:[#allocation13 + $0x808] sm:$0xff]
    %v1521 = vld [vmem:[#allocation13 + $0x810] sm:$0xff]
    %v1522 = vld [vmem:[#allocation13 + $0x818] sm:$0xff]
    %v1523 = vld [vmem:[#allocation13 + $0x820] sm:$0xff]
    %v1524 = vld [vmem:[#allocation13 + $0x828] sm:$0xff]
    %v1525 = vld [vmem:[#allocation13 + $0x830] sm:$0xff]
    %v1526 = vld [vmem:[#allocation13 + $0x838] sm:$0xff]
    %v1527 = vld [vmem:[#allocation13 + $0x840] sm:$0xff]
    %v1528 = vld [vmem:[#allocation13 + $0x848] sm:$0xff]
    %v1529 = vld [vmem:[#allocation13 + $0x850] sm:$0xff]
    %v1530 = vld [vmem:[#allocation13 + $0x858] sm:$0xff]
    %v1531 = vld [vmem:[#allocation13 + $0x860] sm:$0xff]
    %v1532 = vld [vmem:[#allocation13 + $0x868] sm:$0xff]
    %v1533 = vld [vmem:[#allocation13 + $0x870] sm:$0xff]
    %v1534 = vld [vmem:[#allocation13 + $0x878] sm:$0xff]
    %v1535 = vld [vmem:[#allocation13 + $0x880] sm:$0xff]
    %v1536 = vld [vmem:[#allocation13 + $0x888] sm:$0xff]
    %v1537 = vld [vmem:[#allocation13 + $0x890] sm:$0xff]
    %v1538 = vld [vmem:[#allocation13 + $0x898] sm:$0xff]
    %v1539 = vld [vmem:[#allocation13 + $0x8a0] sm:$0xff]
    %v1540 = vld [vmem:[#allocation13 + $0x8a8] sm:$0xff]
    %v1541 = vld [vmem:[#allocation13 + $0x8b0] sm:$0xff]
    %v1542 = vld [vmem:[#allocation13 + $0x8b8] sm:$0xff]
    %v1543 = vld [vmem:[#allocation13 + $0x8c0] sm:$0xff]
    %v1544 = vld [vmem:[#allocation13 + $0x8c8] sm:$0xff]
    %v1545 = vld [vmem:[#allocation13 + $0x8d0] sm:$0xff]
    %v1546 = vld [vmem:[#allocation13 + $0x8d8] sm:$0xff]
    %v1547 = vld [vmem:[#allocation13 + $0x8e0] sm:$0xff]
    %v1548 = vld [vmem:[#allocation13 + $0x8e8] sm:$0xff]
    %v1549 = vld [vmem:[#allocation13 + $0x8f0] sm:$0xff]
    %v1550 = vld [vmem:[#allocation13 + $0x8f8] sm:$0xff]
    %v1551 = vld [vmem:[#allocation13 + $0x900] sm:$0xff]
    %v1552 = vld [vmem:[#allocation13 + $0x908] sm:$0xff]
    %v1553 = vld [vmem:[#allocation13 + $0x910] sm:$0xff]
    %v1554 = vld [vmem:[#allocation13 + $0x918] sm:$0xff]
    %v1555 = vld [vmem:[#allocation13 + $0x920] sm:$0xff]
    %v1556 = vld [vmem:[#allocation13 + $0x928] sm:$0xff]
    %v1557 = vld [vmem:[#allocation13 + $0x930] sm:$0xff]
    %v1558 = vld [vmem:[#allocation13 + $0x938] sm:$0xff]
    %v1559 = vld [vmem:[#allocation13 + $0x940] sm:$0xff]
    %v1560 = vld [vmem:[#allocation13 + $0x948] sm:$0xff]
    %v1561 = vld [vmem:[#allocation13 + $0x950] sm:$0xff]
    %v1562 = vld [vmem:[#allocation13 + $0x958] sm:$0xff]
    %v1563 = vld [vmem:[#allocation13 + $0x960] sm:$0xff]
    %v1564 = vld [vmem:[#allocation13 + $0x968] sm:$0xff]
    %v1565 = vld [vmem:[#allocation13 + $0x970] sm:$0xff]
    %v1566 = vld [vmem:[#allocation13 + $0x978] sm:$0xff]
    %v1567 = vld [vmem:[#allocation13 + $0x980] sm:$0xff]
    %v1568 = vld [vmem:[#allocation13 + $0x988] sm:$0xff]
    %v1569 = vld [vmem:[#allocation13 + $0x990] sm:$0xff]
    %v1570 = vld [vmem:[#allocation13 + $0x998] sm:$0xff]
    %v1571 = vld [vmem:[#allocation13 + $0x9a0] sm:$0xff]
    %v1572 = vld [vmem:[#allocation13 + $0x9a8] sm:$0xff]
    %v1573 = vld [vmem:[#allocation13 + $0x9b0] sm:$0xff]
    %v1574 = vld [vmem:[#allocation13 + $0x9b8] sm:$0xff]
    %v1575 = vld [vmem:[#allocation13 + $0x9c0] sm:$0xff]
    %v1576 = vld [vmem:[#allocation13 + $0x9c8] sm:$0xff]
    %v1577 = vld [vmem:[#allocation13 + $0x9d0] sm:$0xff]
    %v1578 = vld [vmem:[#allocation13 + $0x9d8] sm:$0xff]
    %v1579 = vld [vmem:[#allocation13 + $0x9e0] sm:$0xff]
    %v1580 = vld [vmem:[#allocation13 + $0x9e8] sm:$0xff]
    %v1581 = vld [vmem:[#allocation13 + $0x9f0] sm:$0xff]
    %v1582 = vld [vmem:[#allocation13 + $0x9f8] sm:$0xff]
    %v1583 = vld [vmem:[#allocation13 + $0xa00] sm:$0xff]
    %v1584 = vld [vmem:[#allocation13 + $0xa08] sm:$0xff]
    %v1585 = vld [vmem:[#allocation13 + $0xa10] sm:$0xff]
    %v1586 = vld [vmem:[#allocation13 + $0xa18] sm:$0xff]
    %v1587 = vld [vmem:[#allocation13 + $0xa20] sm:$0xff]
    %v1588 = vld [vmem:[#allocation13 + $0xa28] sm:$0xff]
    %v1589 = vld [vmem:[#allocation13 + $0xa30] sm:$0xff]
    %v1590 = vld [vmem:[#allocation13 + $0xa38] sm:$0xff]
    %v1591 = vld [vmem:[#allocation13 + $0xa40] sm:$0xff]
    %v1592 = vld [vmem:[#allocation13 + $0xa48] sm:$0xff]
    %v1593 = vld [vmem:[#allocation13 + $0xa50] sm:$0xff]
    %v1594 = vld [vmem:[#allocation13 + $0xa58] sm:$0xff]
    %v1595 = vld [vmem:[#allocation13 + $0xa60] sm:$0xff]
    %v1596 = vld [vmem:[#allocation13 + $0xa68] sm:$0xff]
    %v1597 = vld [vmem:[#allocation13 + $0xa70] sm:$0xff]
    %v1598 = vld [vmem:[#allocation13 + $0xa78] sm:$0xff]
    %v1599 = vld [vmem:[#allocation13 + $0xa80] sm:$0xff]
    %v1600 = vld [vmem:[#allocation13 + $0xa88] sm:$0xff]
    %v1601 = vld [vmem:[#allocation13 + $0xa90] sm:$0xff]
    %v1602 = vld [vmem:[#allocation13 + $0xa98] sm:$0xff]
    %v1603 = vld [vmem:[#allocation13 + $0xaa0] sm:$0xff]
    %v1604 = vld [vmem:[#allocation13 + $0xaa8] sm:$0xff]
    %v1605 = vld [vmem:[#allocation13 + $0xab0] sm:$0xff]
    %v1606 = vld [vmem:[#allocation13 + $0xab8] sm:$0xff]
    %v1607 = vld [vmem:[#allocation13 + $0xac0] sm:$0xff]
    %v1608 = vld [vmem:[#allocation13 + $0xac8] sm:$0xff]
    %v1609 = vld [vmem:[#allocation13 + $0xad0] sm:$0xff]
    %v1610 = vld [vmem:[#allocation13 + $0xad8] sm:$0xff]
    %v1611 = vld [vmem:[#allocation13 + $0xae0] sm:$0xff]
    %v1612 = vld [vmem:[#allocation13 + $0xae8] sm:$0xff]
    %v1613 = vld [vmem:[#allocation13 + $0xaf0] sm:$0xff]
    %v1614 = vld [vmem:[#allocation13 + $0xaf8] sm:$0xff]
    %v1615 = vld [vmem:[#allocation13 + $0xb00] sm:$0xff]
    %v1616 = vld [vmem:[#allocation13 + $0xb08] sm:$0xff]
    %v1617 = vld [vmem:[#allocation13 + $0xb10] sm:$0xff]
    %v1618 = vld [vmem:[#allocation13 + $0xb18] sm:$0xff]
    %v1619 = vld [vmem:[#allocation13 + $0xb20] sm:$0xff]
    %v1620 = vld [vmem:[#allocation13 + $0xb28] sm:$0xff]
    %v1621 = vld [vmem:[#allocation13 + $0xb30] sm:$0xff]
    %v1622 = vld [vmem:[#allocation13 + $0xb38] sm:$0xff]
    %v1623 = vld [vmem:[#allocation13 + $0xb40] sm:$0xff]
    %v1624 = vld [vmem:[#allocation13 + $0xb48] sm:$0xff]
    %v1625 = vld [vmem:[#allocation13 + $0xb50] sm:$0xff]
    %v1626 = vld [vmem:[#allocation13 + $0xb58] sm:$0xff]
    %v1627 = vld [vmem:[#allocation13 + $0xb60] sm:$0xff]
    %v1628 = vld [vmem:[#allocation13 + $0xb68] sm:$0xff]
    %v1629 = vld [vmem:[#allocation13 + $0xb70] sm:$0xff]
    %v1630 = vld [vmem:[#allocation13 + $0xb78] sm:$0xff]
    %v1631 = vld [vmem:[#allocation13 + $0xb80] sm:$0xff]
    %v1632 = vld [vmem:[#allocation13 + $0xb88] sm:$0xff]
    %v1633 = vld [vmem:[#allocation13 + $0xb90] sm:$0xff]
    %v1634 = vld [vmem:[#allocation13 + $0xb98] sm:$0xff]
    %v1635 = vld [vmem:[#allocation13 + $0xba0] sm:$0xff]
    %v1636 = vld [vmem:[#allocation13 + $0xba8] sm:$0xff]
    %v1637 = vld [vmem:[#allocation13 + $0xbb0] sm:$0xff]
    %v1638 = vld [vmem:[#allocation13 + $0xbb8] sm:$0xff]
    %v1639 = vld [vmem:[#allocation13 + $0xbc0] sm:$0xff]
    %v1640 = vld [vmem:[#allocation13 + $0xbc8] sm:$0xff]
    %v1641 = vld [vmem:[#allocation13 + $0xbd0] sm:$0xff]
    %v1642 = vld [vmem:[#allocation13 + $0xbd8] sm:$0xff]
    %v1643 = vld [vmem:[#allocation13 + $0xbe0] sm:$0xff]
    %v1644 = vld [vmem:[#allocation13 + $0xbe8] sm:$0xff]
    %v1645 = vld [vmem:[#allocation13 + $0xbf0] sm:$0xff]
    %v1646 = vld [vmem:[#allocation13 + $0xbf8] sm:$0xff]
    %v1647 = vld [vmem:[#allocation13 + $0xc00] sm:$0xff]
    %v1648 = vld [vmem:[#allocation13 + $0xc08] sm:$0xff]
    %v1649 = vld [vmem:[#allocation13 + $0xc10] sm:$0xff]
    %v1650 = vld [vmem:[#allocation13 + $0xc18] sm:$0xff]
    %v1651 = vld [vmem:[#allocation13 + $0xc20] sm:$0xff]
    %v1652 = vld [vmem:[#allocation13 + $0xc28] sm:$0xff]
    %v1653 = vld [vmem:[#allocation13 + $0xc30] sm:$0xff]
    %v1654 = vld [vmem:[#allocation13 + $0xc38] sm:$0xff]
    %v1655 = vld [vmem:[#allocation13 + $0xc40] sm:$0xff]
    %v1656 = vld [vmem:[#allocation13 + $0xc48] sm:$0xff]
    %v1657 = vld [vmem:[#allocation13 + $0xc50] sm:$0xff]
    %v1658 = vld [vmem:[#allocation13 + $0xc58] sm:$0xff]
    %v1659 = vld [vmem:[#allocation13 + $0xc60] sm:$0xff]
    %v1660 = vld [vmem:[#allocation13 + $0xc68] sm:$0xff]
    %v1661 = vld [vmem:[#allocation13 + $0xc70] sm:$0xff]
    %v1662 = vld [vmem:[#allocation13 + $0xc78] sm:$0xff]
    %v1663 = vld [vmem:[#allocation13 + $0xc80] sm:$0xff]
    %v1664 = vld [vmem:[#allocation13 + $0xc88] sm:$0xff]
    %v1665 = vld [vmem:[#allocation13 + $0xc90] sm:$0xff]
    %v1666 = vld [vmem:[#allocation13 + $0xc98] sm:$0xff]
    %v1667 = vld [vmem:[#allocation13 + $0xca0] sm:$0xff]
    %v1668 = vld [vmem:[#allocation13 + $0xca8] sm:$0xff]
    %v1669 = vld [vmem:[#allocation13 + $0xcb0] sm:$0xff]
    %v1670 = vld [vmem:[#allocation13 + $0xcb8] sm:$0xff]
    %v1671 = vld [vmem:[#allocation13 + $0xcc0] sm:$0xff]
    %v1672 = vld [vmem:[#allocation13 + $0xcc8] sm:$0xff]
    %v1673 = vld [vmem:[#allocation13 + $0xcd0] sm:$0xff]
    %v1674 = vld [vmem:[#allocation13 + $0xcd8] sm:$0xff]
    %v1675 = vld [vmem:[#allocation13 + $0xce0] sm:$0xff]
    %v1676 = vld [vmem:[#allocation13 + $0xce8] sm:$0xff]
    %v1677 = vld [vmem:[#allocation13 + $0xcf0] sm:$0xff]
    %v1678 = vld [vmem:[#allocation13 + $0xcf8] sm:$0xff]
    %v1679 = vld [vmem:[#allocation13 + $0xd00] sm:$0xff]
    %v1680 = vld [vmem:[#allocation13 + $0xd08] sm:$0xff]
    %v1681 = vld [vmem:[#allocation13 + $0xd10] sm:$0xff]
    %v1682 = vld [vmem:[#allocation13 + $0xd18] sm:$0xff]
    %v1683 = vld [vmem:[#allocation13 + $0xd20] sm:$0xff]
    %v1684 = vld [vmem:[#allocation13 + $0xd28] sm:$0xff]
    %v1685 = vld [vmem:[#allocation13 + $0xd30] sm:$0xff]
    %v1686 = vld [vmem:[#allocation13 + $0xd38] sm:$0xff]
    %v1687 = vld [vmem:[#allocation13 + $0xd40] sm:$0xff]
    %v1688 = vld [vmem:[#allocation13 + $0xd48] sm:$0xff]
    %v1689 = vld [vmem:[#allocation13 + $0xd50] sm:$0xff]
    %v1690 = vld [vmem:[#allocation13 + $0xd58] sm:$0xff]
    %v1691 = vld [vmem:[#allocation13 + $0xd60] sm:$0xff]
    %v1692 = vld [vmem:[#allocation13 + $0xd68] sm:$0xff]
    %v1693 = vld [vmem:[#allocation13 + $0xd70] sm:$0xff]
    %v1694 = vld [vmem:[#allocation13 + $0xd78] sm:$0xff]
    %v1695 = vld [vmem:[#allocation13 + $0xd80] sm:$0xff]
    %v1696 = vld [vmem:[#allocation13 + $0xd88] sm:$0xff]
    %v1697 = vld [vmem:[#allocation13 + $0xd90] sm:$0xff]
    %v1698 = vld [vmem:[#allocation13 + $0xd98] sm:$0xff]
    %v1699 = vld [vmem:[#allocation13 + $0xda0] sm:$0xff]
    %v1700 = vld [vmem:[#allocation13 + $0xda8] sm:$0xff]
    %v1701 = vld [vmem:[#allocation13 + $0xdb0] sm:$0xff]
    %v1702 = vld [vmem:[#allocation13 + $0xdb8] sm:$0xff]
    %v1703 = vld [vmem:[#allocation13 + $0xdc0] sm:$0xff]
    %v1704 = vld [vmem:[#allocation13 + $0xdc8] sm:$0xff]
    %v1705 = vld [vmem:[#allocation13 + $0xdd0] sm:$0xff]
    %v1706 = vld [vmem:[#allocation13 + $0xdd8] sm:$0xff]
    %v1707 = vld [vmem:[#allocation13 + $0xde0] sm:$0xff]
    %v1708 = vld [vmem:[#allocation13 + $0xde8] sm:$0xff]
    %v1709 = vld [vmem:[#allocation13 + $0xdf0] sm:$0xff]
    %v1710 = vld [vmem:[#allocation13 + $0xdf8] sm:$0xff]
    %v1711 = vld [vmem:[#allocation13 + $0xe00] sm:$0xff]
    %v1712 = vld [vmem:[#allocation13 + $0xe08] sm:$0xff]
    %v1713 = vld [vmem:[#allocation13 + $0xe10] sm:$0xff]
    %v1714 = vld [vmem:[#allocation13 + $0xe18] sm:$0xff]
    %v1715 = vld [vmem:[#allocation13 + $0xe20] sm:$0xff]
    %v1716 = vld [vmem:[#allocation13 + $0xe28] sm:$0xff]
    %v1717 = vld [vmem:[#allocation13 + $0xe30] sm:$0xff]
    %v1718 = vld [vmem:[#allocation13 + $0xe38] sm:$0xff]
    %v1719 = vld [vmem:[#allocation13 + $0xe40] sm:$0xff]
    %v1720 = vld [vmem:[#allocation13 + $0xe48] sm:$0xff]
    %v1721 = vld [vmem:[#allocation13 + $0xe50] sm:$0xff]
    %v1722 = vld [vmem:[#allocation13 + $0xe58] sm:$0xff]
    %v1723 = vld [vmem:[#allocation13 + $0xe60] sm:$0xff]
    %v1724 = vld [vmem:[#allocation13 + $0xe68] sm:$0xff]
    %v1725 = vld [vmem:[#allocation13 + $0xe70] sm:$0xff]
    %v1726 = vld [vmem:[#allocation13 + $0xe78] sm:$0xff]
    %v1727 = vld [vmem:[#allocation13 + $0xe80] sm:$0xff]
    %v1728 = vld [vmem:[#allocation13 + $0xe88] sm:$0xff]
    %v1729 = vld [vmem:[#allocation13 + $0xe90] sm:$0xff]
    %v1730 = vld [vmem:[#allocation13 + $0xe98] sm:$0xff]
    %v1731 = vld [vmem:[#allocation13 + $0xea0] sm:$0xff]
    %v1732 = vld [vmem:[#allocation13 + $0xea8] sm:$0xff]
    %v1733 = vld [vmem:[#allocation13 + $0xeb0] sm:$0xff]
    %v1734 = vld [vmem:[#allocation13 + $0xeb8] sm:$0xff]
    %v1735 = vld [vmem:[#allocation13 + $0xec0] sm:$0xff]
    %v1736 = vld [vmem:[#allocation13 + $0xec8] sm:$0xff]
    %v1737 = vld [vmem:[#allocation13 + $0xed0] sm:$0xff]
    %v1738 = vld [vmem:[#allocation13 + $0xed8] sm:$0xff]
    %v1739 = vld [vmem:[#allocation13 + $0xee0] sm:$0xff]
    %v1740 = vld [vmem:[#allocation13 + $0xee8] sm:$0xff]
    %v1741 = vld [vmem:[#allocation13 + $0xef0] sm:$0xff]
    %v1742 = vld [vmem:[#allocation13 + $0xef8] sm:$0xff]
    %v1743 = vld [vmem:[#allocation13 + $0xf00] sm:$0xff]
    %v1744 = vld [vmem:[#allocation13 + $0xf08] sm:$0xff]
    %v1745 = vld [vmem:[#allocation13 + $0xf10] sm:$0xff]
    %v1746 = vld [vmem:[#allocation13 + $0xf18] sm:$0xff]
    %v1747 = vld [vmem:[#allocation13 + $0xf20] sm:$0xff]
    %v1748 = vld [vmem:[#allocation13 + $0xf28] sm:$0xff]
    %v1749 = vld [vmem:[#allocation13 + $0xf30] sm:$0xff]
    %v1750 = vld [vmem:[#allocation13 + $0xf38] sm:$0xff]
    %v1751 = vld [vmem:[#allocation13 + $0xf40] sm:$0xff]
    %v1752 = vld [vmem:[#allocation13 + $0xf48] sm:$0xff]
    %v1753 = vld [vmem:[#allocation13 + $0xf50] sm:$0xff]
    %v1754 = vld [vmem:[#allocation13 + $0xf58] sm:$0xff]
    %v1755 = vld [vmem:[#allocation13 + $0xf60] sm:$0xff]
    %v1756 = vld [vmem:[#allocation13 + $0xf68] sm:$0xff]
    %v1757 = vld [vmem:[#allocation13 + $0xf70] sm:$0xff]
    %v1758 = vld [vmem:[#allocation13 + $0xf78] sm:$0xff]
    %v1759 = vld [vmem:[#allocation13 + $0xf80] sm:$0xff]
    %v1760 = vld [vmem:[#allocation13 + $0xf88] sm:$0xff]
    %v1761 = vld [vmem:[#allocation13 + $0xf90] sm:$0xff]
    %v1762 = vld [vmem:[#allocation13 + $0xf98] sm:$0xff]
    %v1763 = vld [vmem:[#allocation13 + $0xfa0] sm:$0xff]
    %v1764 = vld [vmem:[#allocation13 + $0xfa8] sm:$0xff]
    %v1765 = vld [vmem:[#allocation13 + $0xfb0] sm:$0xff]
    %v1766 = vld [vmem:[#allocation13 + $0xfb8] sm:$0xff]
    %v1767 = vld [vmem:[#allocation13 + $0xfc0] sm:$0xff]
    %v1768 = vld [vmem:[#allocation13 + $0xfc8] sm:$0xff]
    %v1769 = vld [vmem:[#allocation13 + $0xfd0] sm:$0xff]
    %v1770 = vld [vmem:[#allocation13 + $0xfd8] sm:$0xff]
    %v1771 = vld [vmem:[#allocation13 + $0xfe0] sm:$0xff]
    %v1772 = vld [vmem:[#allocation13 + $0xfe8] sm:$0xff]
    %v1773 = vld [vmem:[#allocation13 + $0xff0] sm:$0xff]
    %v1774 = vld [vmem:[#allocation13 + $0xff8] sm:$0xff]
    %v1775 = vld [vmem:[#allocation13 + $0x1000] sm:$0xff]
    %v1776 = vld [vmem:[#allocation13 + $0x1008] sm:$0xff]
    %v1777 = vld [vmem:[#allocation13 + $0x1010] sm:$0xff]
    %v1778 = vld [vmem:[#allocation13 + $0x1018] sm:$0xff]
    %v1779 = vld [vmem:[#allocation13 + $0x1020] sm:$0xff]
    %v1780 = vld [vmem:[#allocation13 + $0x1028] sm:$0xff]
    %v1781 = vld [vmem:[#allocation13 + $0x1030] sm:$0xff]
    %v1782 = vld [vmem:[#allocation13 + $0x1038] sm:$0xff]
    %v1783 = vld [vmem:[#allocation13 + $0x1040] sm:$0xff]
    %v1784 = vld [vmem:[#allocation13 + $0x1048] sm:$0xff]
    %v1785 = vld [vmem:[#allocation13 + $0x1050] sm:$0xff]
    %v1786 = vld [vmem:[#allocation13 + $0x1058] sm:$0xff]
    %v1787 = vld [vmem:[#allocation13 + $0x1060] sm:$0xff]
    %v1788 = vld [vmem:[#allocation13 + $0x1068] sm:$0xff]
    %v1789 = vld [vmem:[#allocation13 + $0x1070] sm:$0xff]
    %v1790 = vld [vmem:[#allocation13 + $0x1078] sm:$0xff]
    %v1791 = vld [vmem:[#allocation13 + $0x1080] sm:$0xff]
    %v1792 = vld [vmem:[#allocation13 + $0x1088] sm:$0xff]
    %v1793 = vld [vmem:[#allocation13 + $0x1090] sm:$0xff]
    %v1794 = vld [vmem:[#allocation13 + $0x1098] sm:$0xff]
    %v1795 = vld [vmem:[#allocation13 + $0x10a0] sm:$0xff]
    %v1796 = vld [vmem:[#allocation13 + $0x10a8] sm:$0xff]
    %v1797 = vld [vmem:[#allocation13 + $0x10b0] sm:$0xff]
    %v1798 = vld [vmem:[#allocation13 + $0x10b8] sm:$0xff]
    %v1799 = vld [vmem:[#allocation13 + $0x10c0] sm:$0xff]
    %v1800 = vld [vmem:[#allocation13 + $0x10c8] sm:$0xff]
    %v1801 = vld [vmem:[#allocation13 + $0x10d0] sm:$0xff]
    %v1802 = vld [vmem:[#allocation13 + $0x10d8] sm:$0xff]
    %v1803 = vld [vmem:[#allocation13 + $0x10e0] sm:$0xff]
    %v1804 = vld [vmem:[#allocation13 + $0x10e8] sm:$0xff]
    %v1805 = vld [vmem:[#allocation13 + $0x10f0] sm:$0xff]
    %v1806 = vld [vmem:[#allocation13 + $0x10f8] sm:$0xff]
    %v1807 = vld [vmem:[#allocation13 + $0x1100] sm:$0xff]
    %v1808 = vld [vmem:[#allocation13 + $0x1108] sm:$0xff]
    %v1809 = vld [vmem:[#allocation13 + $0x1110] sm:$0xff]
    %v1810 = vld [vmem:[#allocation13 + $0x1118] sm:$0xff]
    %v1811 = vld [vmem:[#allocation13 + $0x1120] sm:$0xff]
    %v1812 = vld [vmem:[#allocation13 + $0x1128] sm:$0xff]
    %v1813 = vld [vmem:[#allocation13 + $0x1130] sm:$0xff]
    %v1814 = vld [vmem:[#allocation13 + $0x1138] sm:$0xff]
    %v1815 = vld [vmem:[#allocation13 + $0x1140] sm:$0xff]
    %v1816 = vld [vmem:[#allocation13 + $0x1148] sm:$0xff]
    %v1817 = vld [vmem:[#allocation13 + $0x1150] sm:$0xff]
    %v1818 = vld [vmem:[#allocation13 + $0x1158] sm:$0xff]
    %v1819 = vld [vmem:[#allocation13 + $0x1160] sm:$0xff]
    %v1820 = vld [vmem:[#allocation13 + $0x1168] sm:$0xff]
    %v1821 = vld [vmem:[#allocation13 + $0x1170] sm:$0xff]
    %v1822 = vld [vmem:[#allocation13 + $0x1178] sm:$0xff]
    %v1823 = vld [vmem:[#allocation13 + $0x1180] sm:$0xff]
    %v1824 = vld [vmem:[#allocation13 + $0x1188] sm:$0xff]
    %v1825 = vld [vmem:[#allocation13 + $0x1190] sm:$0xff]
    %v1826 = vld [vmem:[#allocation13 + $0x1198] sm:$0xff]
    %v1827 = vld [vmem:[#allocation13 + $0x11a0] sm:$0xff]
    %v1828 = vld [vmem:[#allocation13 + $0x11a8] sm:$0xff]
    %v1829 = vld [vmem:[#allocation13 + $0x11b0] sm:$0xff]
    %v1830 = vld [vmem:[#allocation13 + $0x11b8] sm:$0xff]
    %v1831 = vld [vmem:[#allocation13 + $0x11c0] sm:$0xff]
    %v1832 = vld [vmem:[#allocation13 + $0x11c8] sm:$0xff]
    %v1833 = vld [vmem:[#allocation13 + $0x11d0] sm:$0xff]
    %v1834 = vld [vmem:[#allocation13 + $0x11d8] sm:$0xff]
    %v1835 = vld [vmem:[#allocation13 + $0x11e0] sm:$0xff]
    %v1836 = vld [vmem:[#allocation13 + $0x11e8] sm:$0xff]
    %v1837 = vld [vmem:[#allocation13 + $0x11f0] sm:$0xff]
    %v1838 = vld [vmem:[#allocation13 + $0x11f8] sm:$0xff]
    %1839 = vmatprep.subr.mxu0 %v1354
    %1840 = vmatpush1.msra.mxu0 %v1353
    %1841 = vmatprep.subr.mxu0 %v1348
    %1842 = vmatpush1.msra.mxu0 %v1347
    %1843 = vmatprep.subr.mxu0 %v1342
    %1844 = vmatpush1.msra.mxu0 %v1341
    %1845 = vmatprep.subr.mxu0 %v1336
    %1846 = vmatpush1.msra.mxu0 %v1335
    %1847 = vmatprep.subr.mxu0 %v1330
    %1848 = vmatpush1.msra.mxu0 %v1329
    %1849 = vmatprep.subr.mxu0 %v1324
    %1850 = vmatpush1.msra.mxu0 %v1323
    %1851 = vmatprep.subr.mxu0 %v1318
    %1852 = vmatpush1.msra.mxu0 %v1317
    %1853 = vmatprep.subr.mxu0 %v1312
    %1854 = vmatpush1.msra.mxu0 %v1311
    %1855 = vmatprep.subr.mxu0 %v1306
    %1856 = vmatpush1.msra.mxu0 %v1305
    %1857 = vmatprep.subr.mxu0 %v1300
    %1858 = vmatpush1.msra.mxu0 %v1299
    %1859 = vmatprep.subr.mxu0 %v1294
    %1860 = vmatpush1.msra.mxu0 %v1293
    %1861 = vmatprep.subr.mxu0 %v1288
    %1862 = vmatpush1.msra.mxu0 %v1287
    %1863 = vmatprep.subr.mxu0 %v1282
    %1864 = vmatpush1.msra.mxu0 %v1281
    %1865 = vmatprep.subr.mxu0 %v1276
    %1866 = vmatpush1.msra.mxu0 %v1275
    %1867 = vmatprep.subr.mxu0 %v1270
    %1868 = vmatpush1.msra.mxu0 %v1269
    %1869 = vmatprep.subr.mxu0 %v1264
    %1870 = vmatpush1.msra.mxu0 %v1263
    %1871 = vmatprep.subr.mxu0 %v1450
    %1872 = vmatpush2.msra.mxu0 %v1449
    %1873 = vmatprep.subr.mxu0 %v1444
    %1874 = vmatpush2.msra.mxu0 %v1443
    %1875 = vmatprep.subr.mxu0 %v1438
    %1876 = vmatpush2.msra.mxu0 %v1437
    %1877 = vmatprep.subr.mxu0 %v1432
    %1878 = vmatpush2.msra.mxu0 %v1431
    %1879 = vmatprep.subr.mxu0 %v1426
    %1880 = vmatpush2.msra.mxu0 %v1425
    %1881 = vmatprep.subr.mxu0 %v1420
    %1882 = vmatpush2.msra.mxu0 %v1419
    %1883 = vmatprep.subr.mxu0 %v1414
    %1884 = vmatpush2.msra.mxu0 %v1413
    %1885 = vmatprep.subr.mxu0 %v1408
    %1886 = vmatpush2.msra.mxu0 %v1407
    %1887 = vmatprep.subr.mxu0 %v1402
    %1888 = vmatpush2.msra.mxu0 %v1401
    %1889 = vmatprep.subr.mxu0 %v1396
    %1890 = vmatpush2.msra.mxu0 %v1395
    %1891 = vmatprep.subr.mxu0 %v1390
    %1892 = vmatpush2.msra.mxu0 %v1389
    %1893 = vmatprep.subr.mxu0 %v1384
    %1894 = vmatpush2.msra.mxu0 %v1383
    %1895 = vmatprep.subr.mxu0 %v1378
    %1896 = vmatpush2.msra.mxu0 %v1377
    %1897 = vmatprep.subr.mxu0 %v1372
    %1898 = vmatpush2.msra.mxu0 %v1371
    %1899 = vmatprep.subr.mxu0 %v1366
    %1900 = vmatpush2.msra.mxu0 %v1365
    %1901 = vmatprep.subr.mxu0 %v1360
    %1902 = vmatpush2.msra.mxu0 %v1359
    %1903 = vmatprep.mubr.f32.mxu0 %v1258
    %1904 = vmatmul.mubr.f32.gmra.mxu0 %v1257
    %v1905 = vpop.f32.mrf.mxu0
    %v1906 = vadd.f32 0.0, %v1905
    %v1907 = vpop.f32.mrf.mxu0
    %v1908 = vadd.f32 0.0, %v1907
    %1909 = vdwg.mxu0
    %1910 = vmatprep.subr.mxu0 %v1546
    %1911 = vmatpush1.msra.mxu0 %v1545
    %1912 = vmatprep.subr.mxu0 %v1540
    %1913 = vmatpush1.msra.mxu0 %v1539
    %1914 = vmatprep.subr.mxu0 %v1534
    %1915 = vmatpush1.msra.mxu0 %v1533
    %1916 = vmatprep.subr.mxu0 %v1528
    %1917 = vmatpush1.msra.mxu0 %v1527
    %1918 = vmatprep.subr.mxu0 %v1522
    %1919 = vmatpush1.msra.mxu0 %v1521
    %1920 = vmatprep.subr.mxu0 %v1516
    %1921 = vmatpush1.msra.mxu0 %v1515
    %1922 = vmatprep.subr.mxu0 %v1510
    %1923 = vmatpush1.msra.mxu0 %v1509
    %1924 = vmatprep.subr.mxu0 %v1504
    %1925 = vmatpush1.msra.mxu0 %v1503
    %1926 = vmatprep.subr.mxu0 %v1498
    %1927 = vmatpush1.msra.mxu0 %v1497
    %1928 = vmatprep.subr.mxu0 %v1492
    %1929 = vmatpush1.msra.mxu0 %v1491
    %1930 = vmatprep.subr.mxu0 %v1486
    %1931 = vmatpush1.msra.mxu0 %v1485
    %1932 = vmatprep.subr.mxu0 %v1480
    %1933 = vmatpush1.msra.mxu0 %v1479
    %1934 = vmatprep.subr.mxu0 %v1474
    %1935 = vmatpush1.msra.mxu0 %v1473
    %1936 = vmatprep.subr.mxu0 %v1468
    %1937 = vmatpush1.msra.mxu0 %v1467
    %1938 = vmatprep.subr.mxu0 %v1462
    %1939 = vmatpush1.msra.mxu0 %v1461
    %1940 = vmatprep.subr.mxu0 %v1456
    %1941 = vmatpush1.msra.mxu0 %v1455
    %1942 = vmatprep.subr.mxu0 %v1642
    %1943 = vmatpush2.msra.mxu0 %v1641
    %1944 = vmatprep.subr.mxu0 %v1636
    %1945 = vmatpush2.msra.mxu0 %v1635
    %1946 = vmatprep.subr.mxu0 %v1630
    %1947 = vmatpush2.msra.mxu0 %v1629
    %1948 = vmatprep.subr.mxu0 %v1624
    %1949 = vmatpush2.msra.mxu0 %v1623
    %1950 = vmatprep.subr.mxu0 %v1618
    %1951 = vmatpush2.msra.mxu0 %v1617
    %1952 = vmatprep.subr.mxu0 %v1612
    %1953 = vmatpush2.msra.mxu0 %v1611
    %1954 = vmatprep.subr.mxu0 %v1606
    %1955 = vmatpush2.msra.mxu0 %v1605
    %1956 = vmatprep.subr.mxu0 %v1600
    %1957 = vmatpush2.msra.mxu0 %v1599
    %1958 = vmatprep.subr.mxu0 %v1594
    %1959 = vmatpush2.msra.mxu0 %v1593
    %1960 = vmatprep.subr.mxu0 %v1588
    %1961 = vmatpush2.msra.mxu0 %v1587
    %1962 = vmatprep.subr.mxu0 %v1582
    %1963 = vmatpush2.msra.mxu0 %v1581
    %1964 = vmatprep.subr.mxu0 %v1576
    %1965 = vmatpush2.msra.mxu0 %v1575
    %1966 = vmatprep.subr.mxu0 %v1570
    %1967 = vmatpush2.msra.mxu0 %v1569
    %1968 = vmatprep.subr.mxu0 %v1564
    %1969 = vmatpush2.msra.mxu0 %v1563
    %1970 = vmatprep.subr.mxu0 %v1558
    %1971 = vmatpush2.msra.mxu0 %v1557
    %1972 = vmatprep.subr.mxu0 %v1552
    %1973 = vmatpush2.msra.mxu0 %v1551
    %1974 = vmatprep.mubr.f32.mxu0 %v1260
    %1975 = vmatmul.mubr.f32.gmra.mxu0 %v1259
    %v1976 = vpop.f32.mrf.mxu0
    %v1977 = vadd.f32 %v1906, %v1976
    %v1978 = vpop.f32.mrf.mxu0
    %v1979 = vadd.f32 %v1908, %v1978
    %1980 = vdwg.mxu0
    %1981 = vmatprep.subr.mxu0 %v1738
    %1982 = vmatpush1.msra.mxu0 %v1737
    %1983 = vmatprep.subr.mxu0 %v1732
    %1984 = vmatpush1.msra.mxu0 %v1731
    %1985 = vmatprep.subr.mxu0 %v1726
    %1986 = vmatpush1.msra.mxu0 %v1725
    %1987 = vmatprep.subr.mxu0 %v1720
    %1988 = vmatpush1.msra.mxu0 %v1719
    %1989 = vmatprep.subr.mxu0 %v1714
    %1990 = vmatpush1.msra.mxu0 %v1713
    %1991 = vmatprep.subr.mxu0 %v1708
    %1992 = vmatpush1.msra.mxu0 %v1707
    %1993 = vmatprep.subr.mxu0 %v1702
    %1994 = vmatpush1.msra.mxu0 %v1701
    %1995 = vmatprep.subr.mxu0 %v1696
    %1996 = vmatpush1.msra.mxu0 %v1695
    %1997 = vmatprep.subr.mxu0 %v1690
    %1998 = vmatpush1.msra.mxu0 %v1689
    %1999 = vmatprep.subr.mxu0 %v1684
    %2000 = vmatpush1.msra.mxu0 %v1683
    %2001 = vmatprep.subr.mxu0 %v1678
    %2002 = vmatpush1.msra.mxu0 %v1677
    %2003 = vmatprep.subr.mxu0 %v1672
    %2004 = vmatpush1.msra.mxu0 %v1671
    %2005 = vmatprep.subr.mxu0 %v1666
    %2006 = vmatpush1.msra.mxu0 %v1665
    %2007 = vmatprep.subr.mxu0 %v1660
    %2008 = vmatpush1.msra.mxu0 %v1659
    %2009 = vmatprep.subr.mxu0 %v1654
    %2010 = vmatpush1.msra.mxu0 %v1653
    %2011 = vmatprep.subr.mxu0 %v1648
    %2012 = vmatpush1.msra.mxu0 %v1647
    %2013 = vmatprep.subr.mxu0 %v1834
    %2014 = vmatpush2.msra.mxu0 %v1833
    %2015 = vmatprep.subr.mxu0 %v1828
    %2016 = vmatpush2.msra.mxu0 %v1827
    %2017 = vmatprep.subr.mxu0 %v1822
    %2018 = vmatpush2.msra.mxu0 %v1821
    %2019 = vmatprep.subr.mxu0 %v1816
    %2020 = vmatpush2.msra.mxu0 %v1815
    %2021 = vmatprep.subr.mxu0 %v1810
    %2022 = vmatpush2.msra.mxu0 %v1809
    %2023 = vmatprep.subr.mxu0 %v1804
    %2024 = vmatpush2.msra.mxu0 %v1803
    %2025 = vmatprep.subr.mxu0 %v1798
    %2026 = vmatpush2.msra.mxu0 %v1797
    %2027 = vmatprep.subr.mxu0 %v1792
    %2028 = vmatpush2.msra.mxu0 %v1791
    %2029 = vmatprep.subr.mxu0 %v1786
    %2030 = vmatpush2.msra.mxu0 %v1785
    %2031 = vmatprep.subr.mxu0 %v1780
    %2032 = vmatpush2.msra.mxu0 %v1779
    %2033 = vmatprep.subr.mxu0 %v1774
    %2034 = vmatpush2.msra.mxu0 %v1773
    %2035 = vmatprep.subr.mxu0 %v1768
    %2036 = vmatpush2.msra.mxu0 %v1767
    %2037 = vmatprep.subr.mxu0 %v1762
    %2038 = vmatpush2.msra.mxu0 %v1761
    %2039 = vmatprep.subr.mxu0 %v1756
    %2040 = vmatpush2.msra.mxu0 %v1755
    %2041 = vmatprep.subr.mxu0 %v1750
    %2042 = vmatpush2.msra.mxu0 %v1749
    %2043 = vmatprep.subr.mxu0 %v1744
    %2044 = vmatpush2.msra.mxu0 %v1743
    %2045 = vmatprep.mubr.f32.mxu0 %v1262
    %2046 = vmatmul.mubr.f32.gmra.mxu0 %v1261
    %v2047 = vpop.f32.mrf.mxu0
    %v2048 = vadd.f32 %v1977, %v2047
    %v2049 = vpop.f32.mrf.mxu0
    %v2050 = vadd.f32 %v1979, %v2049
    %2051 = vdwg.mxu0
    %2052 = vmatprep.subr.mxu0 %v1356
    %2053 = vmatpush1.msra.mxu0 %v1355
    %2054 = vmatprep.subr.mxu0 %v1350
    %2055 = vmatpush1.msra.mxu0 %v1349
    %2056 = vmatprep.subr.mxu0 %v1344
    %2057 = vmatpush1.msra.mxu0 %v1343
    %2058 = vmatprep.subr.mxu0 %v1338
    %2059 = vmatpush1.msra.mxu0 %v1337
    %2060 = vmatprep.subr.mxu0 %v1332
    %2061 = vmatpush1.msra.mxu0 %v1331
    %2062 = vmatprep.subr.mxu0 %v1326
    %2063 = vmatpush1.msra.mxu0 %v1325
    %2064 = vmatprep.subr.mxu0 %v1320
    %2065 = vmatpush1.msra.mxu0 %v1319
    %2066 = vmatprep.subr.mxu0 %v1314
    %2067 = vmatpush1.msra.mxu0 %v1313
    %2068 = vmatprep.subr.mxu0 %v1308
    %2069 = vmatpush1.msra.mxu0 %v1307
    %2070 = vmatprep.subr.mxu0 %v1302
    %2071 = vmatpush1.msra.mxu0 %v1301
    %2072 = vmatprep.subr.mxu0 %v1296
    %2073 = vmatpush1.msra.mxu0 %v1295
    %2074 = vmatprep.subr.mxu0 %v1290
    %2075 = vmatpush1.msra.mxu0 %v1289
    %2076 = vmatprep.subr.mxu0 %v1284
    %2077 = vmatpush1.msra.mxu0 %v1283
    %2078 = vmatprep.subr.mxu0 %v1278
    %2079 = vmatpush1.msra.mxu0 %v1277
    %2080 = vmatprep.subr.mxu0 %v1272
    %2081 = vmatpush1.msra.mxu0 %v1271
    %2082 = vmatprep.subr.mxu0 %v1266
    %2083 = vmatpush1.msra.mxu0 %v1265
    %2084 = vmatprep.subr.mxu0 %v1452
    %2085 = vmatpush2.msra.mxu0 %v1451
    %2086 = vmatprep.subr.mxu0 %v1446
    %2087 = vmatpush2.msra.mxu0 %v1445
    %2088 = vmatprep.subr.mxu0 %v1440
    %2089 = vmatpush2.msra.mxu0 %v1439
    %2090 = vmatprep.subr.mxu0 %v1434
    %2091 = vmatpush2.msra.mxu0 %v1433
    %2092 = vmatprep.subr.mxu0 %v1428
    %2093 = vmatpush2.msra.mxu0 %v1427
    %2094 = vmatprep.subr.mxu0 %v1422
    %2095 = vmatpush2.msra.mxu0 %v1421
    %2096 = vmatprep.subr.mxu0 %v1416
    %2097 = vmatpush2.msra.mxu0 %v1415
    %2098 = vmatprep.subr.mxu0 %v1410
    %2099 = vmatpush2.msra.mxu0 %v1409
    %2100 = vmatprep.subr.mxu0 %v1404
    %2101 = vmatpush2.msra.mxu0 %v1403
    %2102 = vmatprep.subr.mxu0 %v1398
    %2103 = vmatpush2.msra.mxu0 %v1397
    %2104 = vmatprep.subr.mxu0 %v1392
    %2105 = vmatpush2.msra.mxu0 %v1391
    %2106 = vmatprep.subr.mxu0 %v1386
    %2107 = vmatpush2.msra.mxu0 %v1385
    %2108 = vmatprep.subr.mxu0 %v1380
    %2109 = vmatpush2.msra.mxu0 %v1379
    %2110 = vmatprep.subr.mxu0 %v1374
    %2111 = vmatpush2.msra.mxu0 %v1373
    %2112 = vmatprep.subr.mxu0 %v1368
    %2113 = vmatpush2.msra.mxu0 %v1367
    %2114 = vmatprep.subr.mxu0 %v1362
    %2115 = vmatpush2.msra.mxu0 %v1361
    %2116 = vmatprep.mubr.f32.mxu0 %v1258
    %2117 = vmatmul.mubr.f32.gmra.mxu0 %v1257
    %v2118 = vpop.f32.mrf.mxu0
    %v2119 = vadd.f32 0.0, %v2118
    %v2120 = vpop.f32.mrf.mxu0
    %v2121 = vadd.f32 0.0, %v2120
    %2122 = vdwg.mxu0
    %2123 = vmatprep.subr.mxu0 %v1548
    %2124 = vmatpush1.msra.mxu0 %v1547
    %2125 = vmatprep.subr.mxu0 %v1542
    %2126 = vmatpush1.msra.mxu0 %v1541
    %2127 = vmatprep.subr.mxu0 %v1536
    %2128 = vmatpush1.msra.mxu0 %v1535
    %2129 = vmatprep.subr.mxu0 %v1530
    %2130 = vmatpush1.msra.mxu0 %v1529
    %2131 = vmatprep.subr.mxu0 %v1524
    %2132 = vmatpush1.msra.mxu0 %v1523
    %2133 = vmatprep.subr.mxu0 %v1518
    %2134 = vmatpush1.msra.mxu0 %v1517
    %2135 = vmatprep.subr.mxu0 %v1512
    %2136 = vmatpush1.msra.mxu0 %v1511
    %2137 = vmatprep.subr.mxu0 %v1506
    %2138 = vmatpush1.msra.mxu0 %v1505
    %2139 = vmatprep.subr.mxu0 %v1500
    %2140 = vmatpush1.msra.mxu0 %v1499
    %2141 = vmatprep.subr.mxu0 %v1494
    %2142 = vmatpush1.msra.mxu0 %v1493
    %2143 = vmatprep.subr.mxu0 %v1488
    %2144 = vmatpush1.msra.mxu0 %v1487
    %2145 = vmatprep.subr.mxu0 %v1482
    %2146 = vmatpush1.msra.mxu0 %v1481
    %2147 = vmatprep.subr.mxu0 %v1476
    %2148 = vmatpush1.msra.mxu0 %v1475
    %2149 = vmatprep.subr.mxu0 %v1470
    %2150 = vmatpush1.msra.mxu0 %v1469
    %2151 = vmatprep.subr.mxu0 %v1464
    %2152 = vmatpush1.msra.mxu0 %v1463
    %2153 = vmatprep.subr.mxu0 %v1458
    %2154 = vmatpush1.msra.mxu0 %v1457
    %2155 = vmatprep.subr.mxu0 %v1644
    %2156 = vmatpush2.msra.mxu0 %v1643
    %2157 = vmatprep.subr.mxu0 %v1638
    %2158 = vmatpush2.msra.mxu0 %v1637
    %2159 = vmatprep.subr.mxu0 %v1632
    %2160 = vmatpush2.msra.mxu0 %v1631
    %2161 = vmatprep.subr.mxu0 %v1626
    %2162 = vmatpush2.msra.mxu0 %v1625
    %2163 = vmatprep.subr.mxu0 %v1620
    %2164 = vmatpush2.msra.mxu0 %v1619
    %2165 = vmatprep.subr.mxu0 %v1614
    %2166 = vmatpush2.msra.mxu0 %v1613
    %2167 = vmatprep.subr.mxu0 %v1608
    %2168 = vmatpush2.msra.mxu0 %v1607
    %2169 = vmatprep.subr.mxu0 %v1602
    %2170 = vmatpush2.msra.mxu0 %v1601
    %2171 = vmatprep.subr.mxu0 %v1596
    %2172 = vmatpush2.msra.mxu0 %v1595
    %2173 = vmatprep.subr.mxu0 %v1590
    %2174 = vmatpush2.msra.mxu0 %v1589
    %2175 = vmatprep.subr.mxu0 %v1584
    %2176 = vmatpush2.msra.mxu0 %v1583
    %2177 = vmatprep.subr.mxu0 %v1578
    %2178 = vmatpush2.msra.mxu0 %v1577
    %2179 = vmatprep.subr.mxu0 %v1572
    %2180 = vmatpush2.msra.mxu0 %v1571
    %2181 = vmatprep.subr.mxu0 %v1566
    %2182 = vmatpush2.msra.mxu0 %v1565
    %2183 = vmatprep.subr.mxu0 %v1560
    %2184 = vmatpush2.msra.mxu0 %v1559
    %2185 = vmatprep.subr.mxu0 %v1554
    %2186 = vmatpush2.msra.mxu0 %v1553
    %2187 = vmatprep.mubr.f32.mxu0 %v1260
    %2188 = vmatmul.mubr.f32.gmra.mxu0 %v1259
    %v2189 = vpop.f32.mrf.mxu0
    %v2190 = vadd.f32 %v2119, %v2189
    %v2191 = vpop.f32.mrf.mxu0
    %v2192 = vadd.f32 %v2121, %v2191
    %2193 = vdwg.mxu0
    %2194 = vmatprep.subr.mxu0 %v1740
    %2195 = vmatpush1.msra.mxu0 %v1739
    %2196 = vmatprep.subr.mxu0 %v1734
    %2197 = vmatpush1.msra.mxu0 %v1733
    %2198 = vmatprep.subr.mxu0 %v1728
    %2199 = vmatpush1.msra.mxu0 %v1727
    %2200 = vmatprep.subr.mxu0 %v1722
    %2201 = vmatpush1.msra.mxu0 %v1721
    %2202 = vmatprep.subr.mxu0 %v1716
    %2203 = vmatpush1.msra.mxu0 %v1715
    %2204 = vmatprep.subr.mxu0 %v1710
    %2205 = vmatpush1.msra.mxu0 %v1709
    %2206 = vmatprep.subr.mxu0 %v1704
    %2207 = vmatpush1.msra.mxu0 %v1703
    %2208 = vmatprep.subr.mxu0 %v1698
    %2209 = vmatpush1.msra.mxu0 %v1697
    %2210 = vmatprep.subr.mxu0 %v1692
    %2211 = vmatpush1.msra.mxu0 %v1691
    %2212 = vmatprep.subr.mxu0 %v1686
    %2213 = vmatpush1.msra.mxu0 %v1685
    %2214 = vmatprep.subr.mxu0 %v1680
    %2215 = vmatpush1.msra.mxu0 %v1679
    %2216 = vmatprep.subr.mxu0 %v1674
    %2217 = vmatpush1.msra.mxu0 %v1673
    %2218 = vmatprep.subr.mxu0 %v1668
    %2219 = vmatpush1.msra.mxu0 %v1667
    %2220 = vmatprep.subr.mxu0 %v1662
    %2221 = vmatpush1.msra.mxu0 %v1661
    %2222 = vmatprep.subr.mxu0 %v1656
    %2223 = vmatpush1.msra.mxu0 %v1655
    %2224 = vmatprep.subr.mxu0 %v1650
    %2225 = vmatpush1.msra.mxu0 %v1649
    %2226 = vmatprep.subr.mxu0 %v1836
    %2227 = vmatpush2.msra.mxu0 %v1835
    %2228 = vmatprep.subr.mxu0 %v1830
    %2229 = vmatpush2.msra.mxu0 %v1829
    %2230 = vmatprep.subr.mxu0 %v1824
    %2231 = vmatpush2.msra.mxu0 %v1823
    %2232 = vmatprep.subr.mxu0 %v1818
    %2233 = vmatpush2.msra.mxu0 %v1817
    %2234 = vmatprep.subr.mxu0 %v1812
    %2235 = vmatpush2.msra.mxu0 %v1811
    %2236 = vmatprep.subr.mxu0 %v1806
    %2237 = vmatpush2.msra.mxu0 %v1805
    %2238 = vmatprep.subr.mxu0 %v1800
    %2239 = vmatpush2.msra.mxu0 %v1799
    %2240 = vmatprep.subr.mxu0 %v1794
    %2241 = vmatpush2.msra.mxu0 %v1793
    %2242 = vmatprep.subr.mxu0 %v1788
    %2243 = vmatpush2.msra.mxu0 %v1787
    %2244 = vmatprep.subr.mxu0 %v1782
    %2245 = vmatpush2.msra.mxu0 %v1781
    %2246 = vmatprep.subr.mxu0 %v1776
    %2247 = vmatpush2.msra.mxu0 %v1775
    %2248 = vmatprep.subr.mxu0 %v1770
    %2249 = vmatpush2.msra.mxu0 %v1769
    %2250 = vmatprep.subr.mxu0 %v1764
    %2251 = vmatpush2.msra.mxu0 %v1763
    %2252 = vmatprep.subr.mxu0 %v1758
    %2253 = vmatpush2.msra.mxu0 %v1757
    %2254 = vmatprep.subr.mxu0 %v1752
    %2255 = vmatpush2.msra.mxu0 %v1751
    %2256 = vmatprep.subr.mxu0 %v1746
    %2257 = vmatpush2.msra.mxu0 %v1745
    %2258 = vmatprep.mubr.f32.mxu0 %v1262
    %2259 = vmatmul.mubr.f32.gmra.mxu0 %v1261
    %v2260 = vpop.f32.mrf.mxu0
    %v2261 = vadd.f32 %v2190, %v2260
    %v2262 = vpop.f32.mrf.mxu0
    %v2263 = vadd.f32 %v2192, %v2262
    %2264 = vdwg.mxu0
    %2265 = vmatprep.subr.mxu0 %v1358
    %2266 = vmatpush1.msra.mxu0 %v1357
    %2267 = vmatprep.subr.mxu0 %v1352
    %2268 = vmatpush1.msra.mxu0 %v1351
    %2269 = vmatprep.subr.mxu0 %v1346
    %2270 = vmatpush1.msra.mxu0 %v1345
    %2271 = vmatprep.subr.mxu0 %v1340
    %2272 = vmatpush1.msra.mxu0 %v1339
    %2273 = vmatprep.subr.mxu0 %v1334
    %2274 = vmatpush1.msra.mxu0 %v1333
    %2275 = vmatprep.subr.mxu0 %v1328
    %2276 = vmatpush1.msra.mxu0 %v1327
    %2277 = vmatprep.subr.mxu0 %v1322
    %2278 = vmatpush1.msra.mxu0 %v1321
    %2279 = vmatprep.subr.mxu0 %v1316
    %2280 = vmatpush1.msra.mxu0 %v1315
    %2281 = vmatprep.subr.mxu0 %v1310
    %2282 = vmatpush1.msra.mxu0 %v1309
    %2283 = vmatprep.subr.mxu0 %v1304
    %2284 = vmatpush1.msra.mxu0 %v1303
    %2285 = vmatprep.subr.mxu0 %v1298
    %2286 = vmatpush1.msra.mxu0 %v1297
    %2287 = vmatprep.subr.mxu0 %v1292
    %2288 = vmatpush1.msra.mxu0 %v1291
    %2289 = vmatprep.subr.mxu0 %v1286
    %2290 = vmatpush1.msra.mxu0 %v1285
    %2291 = vmatprep.subr.mxu0 %v1280
    %2292 = vmatpush1.msra.mxu0 %v1279
    %2293 = vmatprep.subr.mxu0 %v1274
    %2294 = vmatpush1.msra.mxu0 %v1273
    %2295 = vmatprep.subr.mxu0 %v1268
    %2296 = vmatpush1.msra.mxu0 %v1267
    %2297 = vmatprep.subr.mxu0 %v1454
    %2298 = vmatpush2.msra.mxu0 %v1453
    %2299 = vmatprep.subr.mxu0 %v1448
    %2300 = vmatpush2.msra.mxu0 %v1447
    %2301 = vmatprep.subr.mxu0 %v1442
    %2302 = vmatpush2.msra.mxu0 %v1441
    %2303 = vmatprep.subr.mxu0 %v1436
    %2304 = vmatpush2.msra.mxu0 %v1435
    %2305 = vmatprep.subr.mxu0 %v1430
    %2306 = vmatpush2.msra.mxu0 %v1429
    %2307 = vmatprep.subr.mxu0 %v1424
    %2308 = vmatpush2.msra.mxu0 %v1423
    %2309 = vmatprep.subr.mxu0 %v1418
    %2310 = vmatpush2.msra.mxu0 %v1417
    %2311 = vmatprep.subr.mxu0 %v1412
    %2312 = vmatpush2.msra.mxu0 %v1411
    %2313 = vmatprep.subr.mxu0 %v1406
    %2314 = vmatpush2.msra.mxu0 %v1405
    %2315 = vmatprep.subr.mxu0 %v1400
    %2316 = vmatpush2.msra.mxu0 %v1399
    %2317 = vmatprep.subr.mxu0 %v1394
    %2318 = vmatpush2.msra.mxu0 %v1393
    %2319 = vmatprep.subr.mxu0 %v1388
    %2320 = vmatpush2.msra.mxu0 %v1387
    %2321 = vmatprep.subr.mxu0 %v1382
    %2322 = vmatpush2.msra.mxu0 %v1381
    %2323 = vmatprep.subr.mxu0 %v1376
    %2324 = vmatpush2.msra.mxu0 %v1375
    %2325 = vmatprep.subr.mxu0 %v1370
    %2326 = vmatpush2.msra.mxu0 %v1369
    %2327 = vmatprep.subr.mxu0 %v1364
    %2328 = vmatpush2.msra.mxu0 %v1363
    %2329 = vmatprep.mubr.f32.mxu0 %v1258
    %2330 = vmatmul.mubr.f32.gmra.mxu0 %v1257
    %v2331 = vpop.f32.mrf.mxu0
    %v2332 = vadd.f32 0.0, %v2331
    %v2333 = vpop.f32.mrf.mxu0
    %v2334 = vadd.f32 0.0, %v2333
    %2335 = vdwg.mxu0
    %2336 = vmatprep.subr.mxu0 %v1550
    %2337 = vmatpush1.msra.mxu0 %v1549
    %2338 = vmatprep.subr.mxu0 %v1544
    %2339 = vmatpush1.msra.mxu0 %v1543
    %2340 = vmatprep.subr.mxu0 %v1538
    %2341 = vmatpush1.msra.mxu0 %v1537
    %2342 = vmatprep.subr.mxu0 %v1532
    %2343 = vmatpush1.msra.mxu0 %v1531
    %2344 = vmatprep.subr.mxu0 %v1526
    %2345 = vmatpush1.msra.mxu0 %v1525
    %2346 = vmatprep.subr.mxu0 %v1520
    %2347 = vmatpush1.msra.mxu0 %v1519
    %2348 = vmatprep.subr.mxu0 %v1514
    %2349 = vmatpush1.msra.mxu0 %v1513
    %2350 = vmatprep.subr.mxu0 %v1508
    %2351 = vmatpush1.msra.mxu0 %v1507
    %2352 = vmatprep.subr.mxu0 %v1502
    %2353 = vmatpush1.msra.mxu0 %v1501
    %2354 = vmatprep.subr.mxu0 %v1496
    %2355 = vmatpush1.msra.mxu0 %v1495
    %2356 = vmatprep.subr.mxu0 %v1490
    %2357 = vmatpush1.msra.mxu0 %v1489
    %2358 = vmatprep.subr.mxu0 %v1484
    %2359 = vmatpush1.msra.mxu0 %v1483
    %2360 = vmatprep.subr.mxu0 %v1478
    %2361 = vmatpush1.msra.mxu0 %v1477
    %2362 = vmatprep.subr.mxu0 %v1472
    %2363 = vmatpush1.msra.mxu0 %v1471
    %2364 = vmatprep.subr.mxu0 %v1466
    %2365 = vmatpush1.msra.mxu0 %v1465
    %2366 = vmatprep.subr.mxu0 %v1460
    %2367 = vmatpush1.msra.mxu0 %v1459
    %2368 = vmatprep.subr.mxu0 %v1646
    %2369 = vmatpush2.msra.mxu0 %v1645
    %2370 = vmatprep.subr.mxu0 %v1640
    %2371 = vmatpush2.msra.mxu0 %v1639
    %2372 = vmatprep.subr.mxu0 %v1634
    %2373 = vmatpush2.msra.mxu0 %v1633
    %2374 = vmatprep.subr.mxu0 %v1628
    %2375 = vmatpush2.msra.mxu0 %v1627
    %2376 = vmatprep.subr.mxu0 %v1622
    %2377 = vmatpush2.msra.mxu0 %v1621
    %2378 = vmatprep.subr.mxu0 %v1616
    %2379 = vmatpush2.msra.mxu0 %v1615
    %2380 = vmatprep.subr.mxu0 %v1610
    %2381 = vmatpush2.msra.mxu0 %v1609
    %2382 = vmatprep.subr.mxu0 %v1604
    %2383 = vmatpush2.msra.mxu0 %v1603
    %2384 = vmatprep.subr.mxu0 %v1598
    %2385 = vmatpush2.msra.mxu0 %v1597
    %2386 = vmatprep.subr.mxu0 %v1592
    %2387 = vmatpush2.msra.mxu0 %v1591
    %2388 = vmatprep.subr.mxu0 %v1586
    %2389 = vmatpush2.msra.mxu0 %v1585
    %2390 = vmatprep.subr.mxu0 %v1580
    %2391 = vmatpush2.msra.mxu0 %v1579
    %2392 = vmatprep.subr.mxu0 %v1574
    %2393 = vmatpush2.msra.mxu0 %v1573
    %2394 = vmatprep.subr.mxu0 %v1568
    %2395 = vmatpush2.msra.mxu0 %v1567
    %2396 = vmatprep.subr.mxu0 %v1562
    %2397 = vmatpush2.msra.mxu0 %v1561
    %2398 = vmatprep.subr.mxu0 %v1556
    %2399 = vmatpush2.msra.mxu0 %v1555
    %2400 = vmatprep.mubr.f32.mxu0 %v1260
    %2401 = vmatmul.mubr.f32.gmra.mxu0 %v1259
    %v2402 = vpop.f32.mrf.mxu0
    %v2403 = vadd.f32 %v2332, %v2402
    %v2404 = vpop.f32.mrf.mxu0
    %v2405 = vadd.f32 %v2334, %v2404
    %2406 = vdwg.mxu0
    %2407 = vmatprep.subr.mxu0 %v1742
    %2408 = vmatpush1.msra.mxu0 %v1741
    %2409 = vmatprep.subr.mxu0 %v1736
    %2410 = vmatpush1.msra.mxu0 %v1735
    %2411 = vmatprep.subr.mxu0 %v1730
    %2412 = vmatpush1.msra.mxu0 %v1729
    %2413 = vmatprep.subr.mxu0 %v1724
    %2414 = vmatpush1.msra.mxu0 %v1723
    %2415 = vmatprep.subr.mxu0 %v1718
    %2416 = vmatpush1.msra.mxu0 %v1717
    %2417 = vmatprep.subr.mxu0 %v1712
    %2418 = vmatpush1.msra.mxu0 %v1711
    %2419 = vmatprep.subr.mxu0 %v1706
    %2420 = vmatpush1.msra.mxu0 %v1705
    %2421 = vmatprep.subr.mxu0 %v1700
    %2422 = vmatpush1.msra.mxu0 %v1699
    %2423 = vmatprep.subr.mxu0 %v1694
    %2424 = vmatpush1.msra.mxu0 %v1693
    %2425 = vmatprep.subr.mxu0 %v1688
    %2426 = vmatpush1.msra.mxu0 %v1687
    %2427 = vmatprep.subr.mxu0 %v1682
    %2428 = vmatpush1.msra.mxu0 %v1681
    %2429 = vmatprep.subr.mxu0 %v1676
    %2430 = vmatpush1.msra.mxu0 %v1675
    %2431 = vmatprep.subr.mxu0 %v1670
    %2432 = vmatpush1.msra.mxu0 %v1669
    %2433 = vmatprep.subr.mxu0 %v1664
    %2434 = vmatpush1.msra.mxu0 %v1663
    %2435 = vmatprep.subr.mxu0 %v1658
    %2436 = vmatpush1.msra.mxu0 %v1657
    %2437 = vmatprep.subr.mxu0 %v1652
    %2438 = vmatpush1.msra.mxu0 %v1651
    %2439 = vmatprep.subr.mxu0 %v1838
    %2440 = vmatpush2.msra.mxu0 %v1837
    %2441 = vmatprep.subr.mxu0 %v1832
    %2442 = vmatpush2.msra.mxu0 %v1831
    %2443 = vmatprep.subr.mxu0 %v1826
    %2444 = vmatpush2.msra.mxu0 %v1825
    %2445 = vmatprep.subr.mxu0 %v1820
    %2446 = vmatpush2.msra.mxu0 %v1819
    %2447 = vmatprep.subr.mxu0 %v1814
    %2448 = vmatpush2.msra.mxu0 %v1813
    %2449 = vmatprep.subr.mxu0 %v1808
    %2450 = vmatpush2.msra.mxu0 %v1807
    %2451 = vmatprep.subr.mxu0 %v1802
    %2452 = vmatpush2.msra.mxu0 %v1801
    %2453 = vmatprep.subr.mxu0 %v1796
    %2454 = vmatpush2.msra.mxu0 %v1795
    %2455 = vmatprep.subr.mxu0 %v1790
    %2456 = vmatpush2.msra.mxu0 %v1789
    %2457 = vmatprep.subr.mxu0 %v1784
    %2458 = vmatpush2.msra.mxu0 %v1783
    %2459 = vmatprep.subr.mxu0 %v1778
    %2460 = vmatpush2.msra.mxu0 %v1777
    %2461 = vmatprep.subr.mxu0 %v1772
    %2462 = vmatpush2.msra.mxu0 %v1771
    %2463 = vmatprep.subr.mxu0 %v1766
    %2464 = vmatpush2.msra.mxu0 %v1765
    %2465 = vmatprep.subr.mxu0 %v1760
    %2466 = vmatpush2.msra.mxu0 %v1759
    %2467 = vmatprep.subr.mxu0 %v1754
    %2468 = vmatpush2.msra.mxu0 %v1753
    %2469 = vmatprep.subr.mxu0 %v1748
    %2470 = vmatpush2.msra.mxu0 %v1747
    %2471 = vmatprep.mubr.f32.mxu0 %v1262
    %2472 = vmatmul.mubr.f32.gmra.mxu0 %v1261
    %v2473 = vpop.f32.mrf.mxu0
    %v2474 = vadd.f32 %v2403, %v2473
    %v2475 = vpop.f32.mrf.mxu0
    %v2476 = vadd.f32 %v2405, %v2475
    %2477 = vdwg.mxu0
    %v2478 = vtanh.pop %v2048
    %v2479 = vtanh.pop %v2050
    %v2480 = vtanh.pop %v2261
    %v2481 = vtanh.pop %v2263
    %v2482 = vtanh.pop %v2474
    %v2483 = vtanh.pop %v2476
    %2484 = vst [vmem:[#allocation14] sm:$0xff] %v2478
    %2485 = vst [vmem:[#allocation14 + $0x8] sm:$0xff] %v2479
    %2486 = vst [vmem:[#allocation14 + $0x10] sm:$0xff] %v2480
    %2487 = vst [vmem:[#allocation14 + $0x18] sm:$0xff] %v2481
    %2488 = vst [vmem:[#allocation14 + $0x20] sm:$0xff] %v2482
    %2489 = vst [vmem:[#allocation14 + $0x28] sm:$0xff] %v2483
    // Predicated region
    $region58: #{generator_forward.1} parent=1 // pred_check
      _
    $region59: #{generator_forward.1} parent=1 // pred_check_branch
      %2491 = sbr.rel (0) target = $region61
    $region60: #{generator_forward.1} parent=1 // pred_region
      %s2493 = ssub.s32 768, 768
      %2494 = vsyncadd [#allocation4], %s2493
      %s2496 = sshll.u32 [#allocation14], 4
      %s2497 = int_to_ptr.vmem [resolvable:$true] %s2496
      %2499 = dma.vmem_to_hbm [thread:$0]  %s2497, 768, %s7, [#allocation4]
    $region61: #{generator_forward.1} parent=1 // pred_fallthru
      _
    // Predicated region
    $region62: #{generator_forward.1} parent=1 // pred_check
      _
    $region63: #{generator_forward.1} parent=1 // pred_check_branch
      %2501 = sbr.rel (0) target = $region65
    $region64: #{generator_forward.1} parent=1 // pred_region
      %2502 = dma.done [#allocation4], 768
    $region65: #{generator_forward.1} parent=1 // pred_fallthru
      _
    %2503 = vsyncpa [#allocation3], 1
    %2504 = vsyncpa [#allocation6], 1
    %2505 = vsyncpa [#allocation9], 1
    %2506 = vsyncpa [#allocation12], 1
    %2507 = vsyncpa [#allocation4], 1

</llo_original>
